<compile_context>
chip_gen: v7x
topology: tpu7x:2x2x1
jax: 0.10.0
libtpu: 0.0.40
codegen_flags: <defaults>
</compile_context>

<pallas_src>
import functools
import math

import jax
import jax.numpy as jnp
from jax.experimental import pallas as pl
from jax.experimental.pallas import tpu as pltpu

_VMEM_LIMIT = 32 * 1024 * 1024
_BN_EPS = 1e-5

_TM_PREF = 1024          # preferred M tile
_TN_FULL_MAX = 1024      # N <= this -> single full-dim N block
_TN_PREF = 512           # tile used when N is larger
_A_BLOCK_BYTES = 4 * 1024 * 1024   # cap on the (tm x K) bf16 activation block


def _round_up(x, m):
    return ((x + m - 1) // m) * m


def _pick_m_tile(m, k):
    """M tile: full-dim if small; otherwise <=1 MiB-ish rows, avoid padding if possible."""
    cap = max(256, (_A_BLOCK_BYTES // max(1, 2 * k)) // 256 * 256)
    pref = min(_TM_PREF, cap)
    if m <= pref:
        return m, m                        # full-dim block, no padding
    for t in (pref, pref // 2, pref // 4, pref // 8):
        if t >= 128 and m % t == 0:
            return t, m
    return pref, _round_up(m, pref)


def _pick_n_tile(n):
    if n <= _TN_FULL_MAX:
        return n, n                        # full-dim block, no padding
    return _TN_PREF, _round_up(n, _TN_PREF)


# --------------------------------------------------------------------------
# Weight-stationary matmul with fused bias / ReLU / residual epilogue
# --------------------------------------------------------------------------
def _mm_ws_kernel(*refs, relu, has_res):
    if has_res:
        a_ref, b_ref, bias_ref, res_ref, o_ref = refs
    else:
        a_ref, b_ref, bias_ref, o_ref = refs
        res_ref = None
    y = jnp.dot(a_ref[...], b_ref[...], preferred_element_type=jnp.float32)
    y = y + bias_ref[...]
    if res_ref is not None:
        y = y + res_ref[...].astype(jnp.float32)
    if relu:
        y = jnp.maximum(y, 0.0)
    o_ref[...] = y.astype(o_ref.dtype)


def _matmul_bias_act(a, b, bias, *, relu, residual=None, out_dtype=jnp.bfloat16):
    """(M,K) @ (K,N) + bias [+ residual] [+ ReLU].  Full-K, weight-stationary."""
    m, k = a.shape
    k2, n = b.shape
    assert k == k2
    tm, mp = _pick_m_tile(m, k)
    tn, np_ = _pick_n_tile(n)

    a = a.astype(jnp.bfloat16)
    b = b.astype(jnp.bfloat16)
    if mp != m:
        a = jnp.pad(a, ((0, mp - m), (0, 0)))
    if np_ != n:
        b = jnp.pad(b, ((0, 0), (0, np_ - n)))
    bias2 = bias.reshape(1, n).astype(jnp.float32)
    if np_ != n:
        bias2 = jnp.pad(bias2, ((0, 0), (0, np_ - n)))

    inputs = [a, b, bias2]
    in_specs = [
        pl.BlockSpec((tm, k), lambda j, i: (i, 0)),     # activations stream over M
        pl.BlockSpec((k, tn), lambda j, i: (0, j)),     # weight: invariant in inner axis
        pl.BlockSpec((1, tn), lambda j, i: (0, j)),
    ]
    if residual is not None:
        r = residual.astype(jnp.bfloat16)
        if (mp, np_) != (m, n):
            r = jnp.pad(r, ((0, mp - m), (0, np_ - n)))
        inputs.append(r)
        in_specs.append(pl.BlockSpec((tm, tn), lambda j, i: (i, j)))

    kernel = functools.partial(_mm_ws_kernel, relu=relu, has_res=residual is not None)
    out = pl.pallas_call(
        kernel,
        out_shape=jax.ShapeDtypeStruct((mp, np_), out_dtype),
        grid=(np_ // tn, mp // tm),                     # M innermost -> weight resident
        in_specs=in_specs,
        out_specs=pl.BlockSpec((tm, tn), lambda j, i: (i, j)),
        compiler_params=pltpu.CompilerParams(
            dimension_semantics=("parallel", "parallel"),
            vmem_limit_bytes=_VMEM_LIMIT),
    )(*inputs)
    if (mp, np_) != (m, n):
        out = out[:m, :n]
    return out


# --------------------------------------------------------------------------
# Fused 3x3 stride-1 conv (no im2col in HBM): whole padded image resident in VMEM,
# 9 taps = 9 contiguous shifted-slab matmuls against a VMEM-resident weight.
# --------------------------------------------------------------------------
def _conv3x3_kernel(x_ref, w_ref, bias_ref, o_ref, *, cin, wp, lp, relu):
    cout = o_ref.shape[-1]
    acc = jnp.zeros((lp, cout), jnp.float32)
    for di in range(3):
        for dj in range(3):
            t = di * 3 + dj
            off = di * wp + dj
            a = x_ref[0, pl.ds(off, lp), :]                    # (lp, cin) shifted slab
            w_t = w_ref[pl.ds(t * cin, cin), :]                # (cin, cout)
            acc = acc + jnp.dot(a, w_t, preferred_element_type=jnp.float32)
    y = acc + bias_ref[...]
    if relu:
        y = jnp.maximum(y, 0.0)
    o_ref[0] = y.astype(o_ref.dtype)


@jax.jit
def _conv3x3_s1_jit(x, w, bias):
    # x: (N, H, W, Cin) NHWC, stride 1, pad 1.  w: (9*Cin, Cout), BN folded.
    n, h, wdt, cin = x.shape
    cout = w.shape[1]
    hp, wp = h + 2, wdt + 2
    ho, wo = h, wdt
    lp = ho * wp                       # output computed at padded width, sliced after
    arows = hp * wp + 2                # +2 so the last garbage column never reads OOB

    xp = jnp.pad(x.astype(jnp.bfloat16), ((0, 0), (1, 1), (1, 1), (0, 0)))
    xflat = xp.reshape(n, hp * wp, cin)
    xflat = jnp.pad(xflat, ((0, 0), (0, 2), (0, 0)))

    kernel = functools.partial(_conv3x3_kernel, cin=cin, wp=wp, lp=lp, relu=True)
    y = pl.pallas_call(
        kernel,
        out_shape=jax.ShapeDtypeStruct((n, lp, cout), jnp.bfloat16),
        grid=(n,),
        in_specs=[
            pl.BlockSpec((1, arows, cin), lambda b: (b, 0, 0)),
            pl.BlockSpec((9 * cin, cout), lambda b: (0, 0)),   # weight resident
            pl.BlockSpec((1, cout), lambda b: (0, 0)),
        ],
        out_specs=pl.BlockSpec((1, lp, cout), lambda b: (b, 0, 0)),
        compiler_params=pltpu.CompilerParams(
            dimension_semantics=("parallel",),
            vmem_limit_bytes=_VMEM_LIMIT),
    )(xflat, w.astype(jnp.bfloat16), bias.reshape(1, cout).astype(jnp.float32))
    return y.reshape(n, ho, wp, cout)[:, :, :wo, :]


# --------------------------------------------------------------------------
# Max-pool 3x3 / stride 2 / pad 1 via 4 even/odd phase arrays (no 9x HBM stack)
# --------------------------------------------------------------------------
def _maxpool_kernel(ee_ref, eo_ref, oe_ref, oo_ref, o_ref, *, ho, wo):
    ee = ee_ref[0]
    eo = eo_ref[0]
    oe = oe_ref[0]
    oo = oo_ref[0]
    r = jnp.maximum(ee[:ho, :wo], ee[:ho, 1:])
    r = jnp.maximum(r, ee[1:, :wo])
    r = jnp.maximum(r, ee[1:, 1:])
    r = jnp.maximum(r, eo[:ho, :wo])
    r = jnp.maximum(r, eo[1:, :wo])
    r = jnp.maximum(r, oe[:ho, :wo])
    r = jnp.maximum(r, oe[:ho, 1:])
    r = jnp.maximum(r, oo[:ho, :wo])
    o_ref[0] = r


@jax.jit
def maxpool_3x3_s2_p1(x):
    # x: (N, H, W, C) -> (N, H/2, W/2, C), matches nn.MaxPool2d(3, stride=2, padding=1)
    n, h, w, c = x.shape
    assert h % 2 == 0 and w % 2 == 0
    ho, wo = h // 2, w // 2
    xp = jnp.pad(x, ((0, 0), (1, 1), (1, 1), (0, 0)), constant_values=-jnp.inf)
    ee = xp[:, 0::2, 0::2, :]
    eo = xp[:, 0::2, 1::2, :]
    oe = xp[:, 1::2, 0::2, :]
    oo = xp[:, 1::2, 1::2, :]
    kernel = functools.partial(_maxpool_kernel, ho=ho, wo=wo)
    return pl.pallas_call(
        kernel,
        out_shape=jax.ShapeDtypeStruct((n, ho, wo, c), x.dtype),
        grid=(n,),
        in_specs=[pl.BlockSpec((1, ho + 1, wo + 1, c), lambda b: (b, 0, 0, 0))] * 4,
        out_specs=pl.BlockSpec((1, ho, wo, c), lambda b: (b, 0, 0, 0)),
        compiler_params=pltpu.CompilerParams(
            dimension_semantics=("parallel",),
            vmem_limit_bytes=_VMEM_LIMIT),
    )(ee, eo, oe, oo)


# --------------------------------------------------------------------------
# Global average pool (AdaptiveAvgPool2d((1,1))), tiled over channels
# --------------------------------------------------------------------------
def _avg_pool_kernel(x_ref, o_ref, *, inv_hw):
    o_ref[...] = jnp.sum(x_ref[...].astype(jnp.float32), axis=1) * inv_hw


@jax.jit
def global_avg_pool(x):
    n, h, w, c = x.shape
    xr = x.reshape(n, h * w, c)
    tc = c if c <= 512 else 512
    cp = _round_up(c, tc)
    if cp != c:
        xr = jnp.pad(xr, ((0, 0), (0, 0), (0, cp - c)))
    kernel = functools.partial(_avg_pool_kernel, inv_hw=1.0 / float(h * w))
    out = pl.pallas_call(
        kernel,
        out_shape=jax.ShapeDtypeStruct((n, cp), jnp.float32),
        grid=(cp // tc,),
        in_specs=[pl.BlockSpec((n, h * w, tc), lambda j: (0, 0, j))],
        out_specs=pl.BlockSpec((n, tc), lambda j: (0, j)),
        compiler_params=pltpu.CompilerParams(
            dimension_semantics=("parallel",),
            vmem_limit_bytes=_VMEM_LIMIT),
    )(xr)
    return out[:, :c]


# --------------------------------------------------------------------------
# Conv wrappers
# --------------------------------------------------------------------------
def _im2col(x, kh, kw, stride, pad):
    n, h, w, c = x.shape
    xp = jnp.pad(x, ((0, 0), (pad, pad), (pad, pad), (0, 0)))
    ho = (h + 2 * pad - kh) // stride + 1
    wo = (w + 2 * pad - kw) // stride + 1
    cols = []
    for i in range(kh):
        for j in range(kw):
            cols.append(xp[:, i:i + stride * ho:stride, j:j + stride * wo:stride, :])
    patches = jnp.concatenate(cols, axis=-1)              # (N, Ho, Wo, kh*kw*C)
    return patches.reshape(n * ho * wo, kh * kw * c), ho, wo


@functools.partial(jax.jit, static_argnames=("kh", "kw", "stride", "relu"))
def _conv_im2col_jit(x, w, bias, *, kh, kw, stride, relu):
    # Only used for the 4 stride-2 convs (7x7 conv1, first 3x3 of stages 2-4).
    pad = (kh - 1) // 2
    cols, ho, wo = _im2col(x.astype(jnp.bfloat16), kh, kw, stride, pad)
    out = _matmul_bias_act(cols, w, bias, relu=relu)
    return out.reshape(x.shape[0], ho, wo, w.shape[1])


@functools.partial(jax.jit, static_argnames=("stride", "relu"))
def _conv1x1_jit(x, w, bias, *, stride, relu):
    if stride > 1:
        x = x[:, ::stride, ::stride, :]
    n, h, wdt, cin = x.shape
    out = _matmul_bias_act(x.reshape(n * h * wdt, cin), w, bias, relu=relu)
    return out.reshape(n, h, wdt, w.shape[1])


@jax.jit
def _conv1x1_res_relu_jit(x, w, bias, res):
    # conv3 (1x1) + folded BN + residual add + ReLU, all in the matmul epilogue.
    n, h, wdt, cin = x.shape
    cout = w.shape[1]
    out = _matmul_bias_act(x.reshape(-1, cin), w, bias, relu=True,
                           residual=res.reshape(-1, cout))
    return out.reshape(n, h, wdt, cout)


@jax.jit
def _fc_jit(feat, w, bias):
    return _matmul_bias_act(feat, w, bias, relu=False, out_dtype=jnp.float32)


# --------------------------------------------------------------------------
# Deterministic parameter init (ResNet-101 shapes, synthetic weights, folded BN)
# --------------------------------------------------------------------------
def init_conv_bn(key, kh, kw, cin, cout):
    std = math.sqrt(2.0 / (kh * kw * cin))
    w = jax.random.normal(key, (kh * kw * cin, cout), jnp.float32) * std
    gamma = jnp.ones((cout,), jnp.float32)
    beta = jnp.zeros((cout,), jnp.float32)
    rmean = jnp.zeros((cout,), jnp.float32)
    rvar = jnp.ones((cout,), jnp.float32)
    scale = gamma / jnp.sqrt(rvar + _BN_EPS)
    bias = beta - rmean * scale
    w_folded = (w * scale[None, :]).astype(jnp.bfloat16)
    return {"w": w_folded, "bias": bias, "kh": kh, "kw": kw}


def init_bottleneck(key, inplanes, planes, stride):
    k1, k2, k3, k4 = jax.random.split(key, 4)
    p = {
        "conv1": init_conv_bn(k1, 1, 1, inplanes, planes),
        "conv2": init_conv_bn(k2, 3, 3, planes, planes),
        "conv3": init_conv_bn(k3, 1, 1, planes, planes * 4),
        "stride": stride,
        "downsample": None,
    }
    if stride != 1 or inplanes != planes * 4:
        p["downsample"] = init_conv_bn(k4, 1, 1, inplanes, planes * 4)
    return p


def init_resnet101(key, num_classes=1000):
    layers = (3, 4, 23, 3)                    # ResNet-101
    stage_planes = (64, 128, 256, 512)
    stage_strides = (1, 2, 2, 2)
    keys = jax.random.split(key, 7)
    params = {"conv1": init_conv_bn(keys[0], 7, 7, 3, 64)}
    inplanes = 64
    stages = []
    for si in range(4):
        bkeys = jax.random.split(keys[1 + si], layers[si])
        blocks = []
        for bi in range(layers[si]):
            stride = stage_strides[si] if bi == 0 else 1
            blocks.append(init_bottleneck(bkeys[bi], inplanes, stage_planes[si], stride))
            inplanes = stage_planes[si] * 4
        stages.append(blocks)
    params["stages"] = stages
    fc_in = 512 * 4
    bound = 1.0 / math.sqrt(fc_in)
    params["fc_w"] = jax.random.uniform(keys[5], (fc_in, num_classes),
                                        jnp.float32, -bound, bound).astype(jnp.bfloat16)
    params["fc_b"] = jax.random.uniform(keys[6], (num_classes,),
                                        jnp.float32, -bound, bound)
    return params


# --------------------------------------------------------------------------
# Forward pass
# --------------------------------------------------------------------------
def bottleneck_forward(x, p):
    stride = p["stride"]
    c1, c2, c3 = p["conv1"], p["conv2"], p["conv3"]
    out = _conv1x1_jit(x, c1["w"], c1["bias"], stride=1, relu=True)
    if stride == 1:
        out = _conv3x3_s1_jit(out, c2["w"], c2["bias"])
    else:
        out = _conv_im2col_jit(out, c2["w"], c2["bias"], kh=3, kw=3,
                               stride=stride, relu=True)
    if p["downsample"] is not None:
        ds = p["downsample"]
        identity = _conv1x1_jit(x, ds["w"], ds["bias"], stride=stride, relu=False)
    else:
        identity = x
    # NOTE: residual is added in f32 inside the epilogue, but identity itself is bf16
    # (small drift vs PyTorch's f32 residual path; acceptable for inference).
    return _conv1x1_res_relu_jit(out, c3["w"], c3["bias"], identity)


def resnet101_forward(params, x_nchw):
    # PyTorch NCHW input -> NHWC bf16 for the TPU kernels
    x = jnp.transpose(x_nchw, (0, 2, 3, 1)).astype(jnp.bfloat16)
    p1 = params["conv1"]
    x = _conv_im2col_jit(x, p1["w"], p1["bias"], kh=7, kw=7, stride=2, relu=True)
    x = maxpool_3x3_s2_p1(x)
    for blocks in params["stages"]:
        for b in blocks:
            x = bottleneck_forward(x, b)
    feat = global_avg_pool(x)                              # (N, 2048) f32
    return _fc_jit(feat, params["fc_w"], params["fc_b"])   # (N, 1000) f32


def siamese_forward(params, input1, input2):
    # SiameseNetwork.forward: backbone weights are shared, so run both branches
    # as one batch (doubles M in every matmul, halves kernel launches) and split.
    x = jnp.concatenate([input1, input2], axis=0)
    logits = resnet101_forward(params, x)
    b = input1.shape[0]
    return logits[:b], logits[b:]


# --------------------------------------------------------------------------
if __name__ == "__main__":
    key = jax.random.PRNGKey(0)
    kp, ka, kb = jax.random.split(key, 3)
    params = init_resnet101(kp, num_classes=1000)

    # Small but structurally valid inputs (spatial 32 keeps every stage >= 1x1)
    x1 = jax.random.normal(ka, (2, 3, 32, 32), jnp.float32)
    x2 = jax.random.normal(kb, (2, 3, 32, 32), jnp.float32)

    out1, out2 = siamese_forward(params, x1, x2)
    out1, out2 = jax.block_until_ready((out1, out2))

    assert out1.shape == (2, 1000) and out2.shape == (2, 1000)
    assert bool(jnp.all(jnp.isfinite(out1))) and bool(jnp.all(jnp.isfinite(out2)))
    print("KERNEL_OK")
</pallas_src>

<mosaic_0001>
module attributes {stable_mosaic.version = 11 : i64} {
  func.func @_mm_ws_kernel(%arg0: i32, %arg1: i32, %arg2: memref<1024x147xbf16, #tpu.memory_space<vmem>>, %arg3: memref<147x64xbf16, #tpu.memory_space<vmem>>, %arg4: memref<1x64xf32, #tpu.memory_space<vmem>>, %arg5: memref<1024x64xbf16, #tpu.memory_space<vmem>>) attributes {dimension_semantics = [#tpu.dimension_semantics<parallel>, #tpu.dimension_semantics<parallel>], iteration_bounds = array<i64: 1, 1>, scalar_prefetch = 0 : i64, scratch_operands = 0 : i64, tpu.core_type = #tpu.core_type<tc>, window_params = [{transform_indices = @transform_0, window_bounds = array<i64: 1024, 147>}, {transform_indices = @transform_1, window_bounds = array<i64: 147, 64>}, {transform_indices = @transform_2, window_bounds = array<i64: 1, 64>}, {transform_indices = @transform_3, window_bounds = array<i64: 1024, 64>}]} {
    %c0 = arith.constant 0 : index
    %c0_0 = arith.constant 0 : index
    %0 = vector.load %arg2[%c0, %c0_0] : memref<1024x147xbf16, #tpu.memory_space<vmem>>, vector<1024x147xbf16>
    %c0_1 = arith.constant 0 : index
    %c0_2 = arith.constant 0 : index
    %1 = vector.load %arg3[%c0_1, %c0_2] : memref<147x64xbf16, #tpu.memory_space<vmem>>, vector<147x64xbf16>
    %cst = arith.constant dense<0.000000e+00> : vector<1024x64xf32>
    %2 = tpu.matmul %0, %1, %cst {dimension_numbers = #tpu.dot_dimension_numbers<[1], [0], [0], [1], [0, 0, 1, 1], [], []>} : vector<1024x147xbf16>, vector<147x64xbf16>, vector<1024x64xf32> -> vector<1024x64xf32>
    %c0_3 = arith.constant 0 : index
    %c0_4 = arith.constant 0 : index
    %3 = vector.load %arg4[%c0_3, %c0_4] : memref<1x64xf32, #tpu.memory_space<vmem>>, vector<1x64xf32>
    %4 = vector.broadcast %3 : vector<1x64xf32> to vector<1024x64xf32>
    %5 = arith.addf %2, %4 : vector<1024x64xf32>
    %cst_5 = arith.constant 0.000000e+00 : f32
    %6 = vector.broadcast %cst_5 : f32 to vector<1024x64xf32>
    %7 = arith.maximumf %5, %6 : vector<1024x64xf32>
    %8 = arith.truncf %7 : vector<1024x64xf32> to vector<1024x64xbf16>
    %c0_6 = arith.constant 0 : index
    %c0_7 = arith.constant 0 : index
    %9 = vector.load %arg5[%c0_6, %c0_7] : memref<1024x64xbf16, #tpu.memory_space<vmem>>, vector<1024x64xbf16>
    tpu.vector_store %arg5[%c0_6, %c0_7], %8 {strides = array<i32>} : memref<1024x64xbf16, #tpu.memory_space<vmem>>, vector<1024x64xbf16>,
    return
  }
  func.func @transform_0(%arg0: i32, %arg1: i32) -> (i32, i32) {
    %c0_i32 = arith.constant 0 : i32
    %c0_i32_0 = arith.constant 0 : i32
    return %arg1, %c0_i32 : i32, i32
  }
  func.func @transform_1(%arg0: i32, %arg1: i32) -> (i32, i32) {
    %c0_i32 = arith.constant 0 : i32
    %c0_i32_0 = arith.constant 0 : i32
    return %c0_i32, %arg0 : i32, i32
  }
  func.func @transform_2(%arg0: i32, %arg1: i32) -> (i32, i32) {
    %c0_i32 = arith.constant 0 : i32
    %c0_i32_0 = arith.constant 0 : i32
    return %c0_i32, %arg0 : i32, i32
  }
  func.func @transform_3(%arg0: i32, %arg1: i32) -> (i32, i32) {
    %c0_i32 = arith.constant 0 : i32
    return %arg1, %arg0 : i32, i32
  }
}

</mosaic_0001>

<llo_original>
// kernel: _conv_im2col_jit.1
$region0: #{_conv_im2col_jit.1}
  #allocation0 [shape = 'u32[]', space=smem, size = 0x4, offset = 0x4, fixed_abs, tag = 'smem constant byte address 0x4 - core index']
  #allocation1 [shape = 'u32[144,128]{1,0:T(1,128)}', space=vmem, size = 0x12000, scoped, tag = 'internal scratch']
  %s0 = inlined_call_operand.vmem [shape: bf16[1024,147], index: 0, kind: input, shape index: {}]
  %s1 = inlined_call_operand.vmem [shape: bf16[147,64], index: 1, kind: input, shape index: {}]
  %s2 = inlined_call_operand.vmem [shape: f32[1,64], index: 2, kind: input, shape index: {}]
  %s3 = inlined_call_operand.hbm [shape: bf16[1024,64], index: 3, kind: output, shape index: {}]
  %s4 = sld [smem:[#allocation0]]
  $region22: #{_conv_im2col_jit.1} parent=0
    _
  %s6 = ssub.s32 1, %s4
  %s7 = scalar_select 0, %s6, %s4
  $region1: #{_conv_im2col_jit.1} parent=0
    #allocation2 [shape = 'u8[262144]{0}', space=vmem, size = 0x40000, scoped, tag = 'output window, operand 0, single buffered']
    #allocation3 [shape = 's32[1]{0}', space=sflag, size = 0x4, scoped, tag = 'scoped memory for _conv_im2col_jit.1']
    %8 = vsyncpa [#allocation3], 0
    // Predicated region
    $region2: #{_conv_im2col_jit.1} parent=1 // pred_check
      _
    $region3: #{_conv_im2col_jit.1} parent=1 // pred_check_branch
      %10 = sbr.rel (0) target = $region5
    $region4: #{_conv_im2col_jit.1} parent=1 // pred_region
      _
    $region5: #{_conv_im2col_jit.1} parent=1 // pred_fallthru
      _
    // Predicated region
    $region6: #{_conv_im2col_jit.1} parent=1 // pred_check
      _
    $region7: #{_conv_im2col_jit.1} parent=1 // pred_check_branch
      %12 = sbr.rel (0) target = $region9
    $region8: #{_conv_im2col_jit.1} parent=1 // pred_region
      _
    $region9: #{_conv_im2col_jit.1} parent=1 // pred_fallthru
      _
    // Predicated region
    $region10: #{_conv_im2col_jit.1} parent=1 // pred_check
      _
    $region11: #{_conv_im2col_jit.1} parent=1 // pred_check_branch
      %14 = sbr.rel (0) target = $region13
    $region12: #{_conv_im2col_jit.1} parent=1 // pred_region
      _
    $region13: #{_conv_im2col_jit.1} parent=1 // pred_fallthru
      _
    %v16 = vld [vmem:[%s0] sm:$0xff]
    %v17 = vld [vmem:[%s0 + $0x8] sm:$0xff]
    %v18 = vld [vmem:[%s0 + $0x10] sm:$0xff]
    %v19 = vld [vmem:[%s0 + $0x18] sm:$0xff]
    %v20 = vld [vmem:[%s0 + $0x20] sm:$0xff]
    %v21 = vld [vmem:[%s0 + $0x28] sm:$0xff]
    %v22 = vld [vmem:[%s0 + $0x30] sm:$0xff]
    %v23 = vld [vmem:[%s0 + $0x38] sm:$0xff]
    %v24 = vld [vmem:[%s0 + $0x40] sm:$0xff]
    %v25 = vld [vmem:[%s0 + $0x48] sm:$0xff]
    %v26 = vld [vmem:[%s0 + $0x50] sm:$0xff]
    %v27 = vld [vmem:[%s0 + $0x58] sm:$0xff]
    %v28 = vld [vmem:[%s0 + $0x60] sm:$0xff]
    %v29 = vld [vmem:[%s0 + $0x68] sm:$0xff]
    %v30 = vld [vmem:[%s0 + $0x70] sm:$0xff]
    %v31 = vld [vmem:[%s0 + $0x78] sm:$0xff]
    %v32 = vld [vmem:[%s0 + $0x80] sm:$0xff]
    %v33 = vld [vmem:[%s0 + $0x88] sm:$0xff]
    %v34 = vld [vmem:[%s0 + $0x90] sm:$0xff]
    %v35 = vld [vmem:[%s0 + $0x98] sm:$0xff]
    %v36 = vld [vmem:[%s0 + $0xa0] sm:$0xff]
    %v37 = vld [vmem:[%s0 + $0xa8] sm:$0xff]
    %v38 = vld [vmem:[%s0 + $0xb0] sm:$0xff]
    %v39 = vld [vmem:[%s0 + $0xb8] sm:$0xff]
    %v40 = vld [vmem:[%s0 + $0xc0] sm:$0xff]
    %v41 = vld [vmem:[%s0 + $0xc8] sm:$0xff]
    %v42 = vld [vmem:[%s0 + $0xd0] sm:$0xff]
    %v43 = vld [vmem:[%s0 + $0xd8] sm:$0xff]
    %v44 = vld [vmem:[%s0 + $0xe0] sm:$0xff]
    %v45 = vld [vmem:[%s0 + $0xe8] sm:$0xff]
    %v46 = vld [vmem:[%s0 + $0xf0] sm:$0xff]
    %v47 = vld [vmem:[%s0 + $0xf8] sm:$0xff]
    %v48 = vld [vmem:[%s0 + $0x100] sm:$0xff]
    %v49 = vld [vmem:[%s0 + $0x108] sm:$0xff]
    %v50 = vld [vmem:[%s0 + $0x110] sm:$0xff]
    %v51 = vld [vmem:[%s0 + $0x118] sm:$0xff]
    %v52 = vld [vmem:[%s0 + $0x120] sm:$0xff]
    %v53 = vld [vmem:[%s0 + $0x128] sm:$0xff]
    %v54 = vld [vmem:[%s0 + $0x130] sm:$0xff]
    %v55 = vld [vmem:[%s0 + $0x138] sm:$0xff]
    %v56 = vld [vmem:[%s0 + $0x140] sm:$0xff]
    %v57 = vld [vmem:[%s0 + $0x148] sm:$0xff]
    %v58 = vld [vmem:[%s0 + $0x150] sm:$0xff]
    %v59 = vld [vmem:[%s0 + $0x158] sm:$0xff]
    %v60 = vld [vmem:[%s0 + $0x160] sm:$0xff]
    %v61 = vld [vmem:[%s0 + $0x168] sm:$0xff]
    %v62 = vld [vmem:[%s0 + $0x170] sm:$0xff]
    %v63 = vld [vmem:[%s0 + $0x178] sm:$0xff]
    %v64 = vld [vmem:[%s0 + $0x180] sm:$0xff]
    %v65 = vld [vmem:[%s0 + $0x188] sm:$0xff]
    %v66 = vld [vmem:[%s0 + $0x190] sm:$0xff]
    %v67 = vld [vmem:[%s0 + $0x198] sm:$0xff]
    %v68 = vld [vmem:[%s0 + $0x1a0] sm:$0xff]
    %v69 = vld [vmem:[%s0 + $0x1a8] sm:$0xff]
    %v70 = vld [vmem:[%s0 + $0x1b0] sm:$0xff]
    %v71 = vld [vmem:[%s0 + $0x1b8] sm:$0xff]
    %v72 = vld [vmem:[%s0 + $0x1c0] sm:$0xff]
    %v73 = vld [vmem:[%s0 + $0x1c8] sm:$0xff]
    %v74 = vld [vmem:[%s0 + $0x1d0] sm:$0xff]
    %v75 = vld [vmem:[%s0 + $0x1d8] sm:$0xff]
    %v76 = vld [vmem:[%s0 + $0x1e0] sm:$0xff]
    %v77 = vld [vmem:[%s0 + $0x1e8] sm:$0xff]
    %v78 = vld [vmem:[%s0 + $0x1f0] sm:$0xff]
    %v79 = vld [vmem:[%s0 + $0x1f8] sm:$0xff]
    %v80 = vld [vmem:[%s0 + $0x200] sm:$0xff]
    %v81 = vld [vmem:[%s0 + $0x208] sm:$0xff]
    %v82 = vld [vmem:[%s0 + $0x210] sm:$0xff]
    %v83 = vld [vmem:[%s0 + $0x218] sm:$0xff]
    %v84 = vld [vmem:[%s0 + $0x220] sm:$0xff]
    %v85 = vld [vmem:[%s0 + $0x228] sm:$0xff]
    %v86 = vld [vmem:[%s0 + $0x230] sm:$0xff]
    %v87 = vld [vmem:[%s0 + $0x238] sm:$0xff]
    %v88 = vld [vmem:[%s0 + $0x240] sm:$0xff]
    %v89 = vld [vmem:[%s0 + $0x248] sm:$0xff]
    %v90 = vld [vmem:[%s0 + $0x250] sm:$0xff]
    %v91 = vld [vmem:[%s0 + $0x258] sm:$0xff]
    %v92 = vld [vmem:[%s0 + $0x260] sm:$0xff]
    %v93 = vld [vmem:[%s0 + $0x268] sm:$0xff]
    %v94 = vld [vmem:[%s0 + $0x270] sm:$0xff]
    %v95 = vld [vmem:[%s0 + $0x278] sm:$0xff]
    %v96 = vld [vmem:[%s0 + $0x280] sm:$0xff]
    %v97 = vld [vmem:[%s0 + $0x288] sm:$0xff]
    %v98 = vld [vmem:[%s0 + $0x290] sm:$0xff]
    %v99 = vld [vmem:[%s0 + $0x298] sm:$0xff]
    %v100 = vld [vmem:[%s0 + $0x2a0] sm:$0xff]
    %v101 = vld [vmem:[%s0 + $0x2a8] sm:$0xff]
    %v102 = vld [vmem:[%s0 + $0x2b0] sm:$0xff]
    %v103 = vld [vmem:[%s0 + $0x2b8] sm:$0xff]
    %v104 = vld [vmem:[%s0 + $0x2c0] sm:$0xff]
    %v105 = vld [vmem:[%s0 + $0x2c8] sm:$0xff]
    %v106 = vld [vmem:[%s0 + $0x2d0] sm:$0xff]
    %v107 = vld [vmem:[%s0 + $0x2d8] sm:$0xff]
    %v108 = vld [vmem:[%s0 + $0x2e0] sm:$0xff]
    %v109 = vld [vmem:[%s0 + $0x2e8] sm:$0xff]
    %v110 = vld [vmem:[%s0 + $0x2f0] sm:$0xff]
    %v111 = vld [vmem:[%s0 + $0x2f8] sm:$0xff]
    %v112 = vld [vmem:[%s0 + $0x300] sm:$0xff]
    %v113 = vld [vmem:[%s0 + $0x308] sm:$0xff]
    %v114 = vld [vmem:[%s0 + $0x310] sm:$0xff]
    %v115 = vld [vmem:[%s0 + $0x318] sm:$0xff]
    %v116 = vld [vmem:[%s0 + $0x320] sm:$0xff]
    %v117 = vld [vmem:[%s0 + $0x328] sm:$0xff]
    %v118 = vld [vmem:[%s0 + $0x330] sm:$0xff]
    %v119 = vld [vmem:[%s0 + $0x338] sm:$0xff]
    %v120 = vld [vmem:[%s0 + $0x340] sm:$0xff]
    %v121 = vld [vmem:[%s0 + $0x348] sm:$0xff]
    %v122 = vld [vmem:[%s0 + $0x350] sm:$0xff]
    %v123 = vld [vmem:[%s0 + $0x358] sm:$0xff]
    %v124 = vld [vmem:[%s0 + $0x360] sm:$0xff]
    %v125 = vld [vmem:[%s0 + $0x368] sm:$0xff]
    %v126 = vld [vmem:[%s0 + $0x370] sm:$0xff]
    %v127 = vld [vmem:[%s0 + $0x378] sm:$0xff]
    %v128 = vld [vmem:[%s0 + $0x380] sm:$0xff]
    %v129 = vld [vmem:[%s0 + $0x388] sm:$0xff]
    %v130 = vld [vmem:[%s0 + $0x390] sm:$0xff]
    %v131 = vld [vmem:[%s0 + $0x398] sm:$0xff]
    %v132 = vld [vmem:[%s0 + $0x3a0] sm:$0xff]
    %v133 = vld [vmem:[%s0 + $0x3a8] sm:$0xff]
    %v134 = vld [vmem:[%s0 + $0x3b0] sm:$0xff]
    %v135 = vld [vmem:[%s0 + $0x3b8] sm:$0xff]
    %v136 = vld [vmem:[%s0 + $0x3c0] sm:$0xff]
    %v137 = vld [vmem:[%s0 + $0x3c8] sm:$0xff]
    %v138 = vld [vmem:[%s0 + $0x3d0] sm:$0xff]
    %v139 = vld [vmem:[%s0 + $0x3d8] sm:$0xff]
    %v140 = vld [vmem:[%s0 + $0x3e0] sm:$0xff]
    %v141 = vld [vmem:[%s0 + $0x3e8] sm:$0xff]
    %v142 = vld [vmem:[%s0 + $0x3f0] sm:$0xff]
    %v143 = vld [vmem:[%s0 + $0x3f8] sm:$0xff]
    %v144 = vld [vmem:[%s1] sm:$0xf]
    %v145 = vld [vmem:[%s1 + $0x4] sm:$0xf]
    %v146 = vld [vmem:[%s1 + $0x8] sm:$0xf]
    %v147 = vld [vmem:[%s1 + $0xc] sm:$0xf]
    %v148 = vld [vmem:[%s1 + $0x10] sm:$0xf]
    %v149 = vld [vmem:[%s1 + $0x14] sm:$0xf]
    %v150 = vld [vmem:[%s1 + $0x18] sm:$0xf]
    %v151 = vld [vmem:[%s1 + $0x1c] sm:$0xf]
    %v152 = vld [vmem:[%s1 + $0x20] sm:$0xf]
    %v153 = vld [vmem:[%s1 + $0x24] sm:$0xf]
    %v154 = vld [vmem:[%s1 + $0x28] sm:$0xf]
    %v155 = vld [vmem:[%s1 + $0x2c] sm:$0xf]
    %v156 = vld [vmem:[%s1 + $0x30] sm:$0xf]
    %v157 = vld [vmem:[%s1 + $0x34] sm:$0xf]
    %v158 = vld [vmem:[%s1 + $0x38] sm:$0xf]
    %v159 = vld [vmem:[%s1 + $0x3c] sm:$0xf]
    %v160 = vld [vmem:[%s1 + $0x40] sm:$0xf]
    %v161 = vld [vmem:[%s1 + $0x44] sm:$0xf]
    %v162 = vld [vmem:[%s1 + $0x48] sm:$0x3]
    %v163 = vld [vmem:[%s2] sm:$0x1]
    %v165 = vlaneseq
    %v166 = vshrl.u32 %v165, 7
    %v167 = vsub.s32 0, %v166
    %v168 = vrot.slane %v163, %v167
    %v298 = vunpack.c.l.b16 %v16
    %v299 = vunpack.c.h.b16 %v16
    %v300 = vunpack.c.l.b16 %v17
    %v301 = vunpack.c.h.b16 %v17
    %v302 = vunpack.c.l.b16 %v18
    %v303 = vunpack.c.h.b16 %v18
    %v304 = vunpack.c.l.b16 %v19
    %v305 = vunpack.c.h.b16 %v19
    %v306 = vunpack.c.l.b16 %v20
    %v307 = vunpack.c.h.b16 %v20
    %v308 = vunpack.c.l.b16 %v21
    %v309 = vunpack.c.h.b16 %v21
    %v310 = vunpack.c.l.b16 %v22
    %v311 = vunpack.c.h.b16 %v22
    %v312 = vunpack.c.l.b16 %v23
    %v313 = vunpack.c.h.b16 %v23
    %v314 = vunpack.c.l.b16 %v24
    %v315 = vunpack.c.h.b16 %v24
    %v316 = vunpack.c.l.b16 %v25
    %v317 = vunpack.c.h.b16 %v25
    %v318 = vunpack.c.l.b16 %v26
    %v319 = vunpack.c.h.b16 %v26
    %v320 = vunpack.c.l.b16 %v27
    %v321 = vunpack.c.h.b16 %v27
    %v322 = vunpack.c.l.b16 %v28
    %v323 = vunpack.c.h.b16 %v28
    %v324 = vunpack.c.l.b16 %v29
    %v325 = vunpack.c.h.b16 %v29
    %v326 = vunpack.c.l.b16 %v30
    %v327 = vunpack.c.h.b16 %v30
    %v328 = vunpack.c.l.b16 %v31
    %v329 = vunpack.c.h.b16 %v31
    %v330 = vunpack.c.l.b16 %v32
    %v331 = vunpack.c.h.b16 %v32
    %v332 = vunpack.c.l.b16 %v33
    %v333 = vunpack.c.h.b16 %v33
    %v334 = vunpack.c.l.b16 %v34
    %v335 = vunpack.c.h.b16 %v34
    %v336 = vunpack.c.l.b16 %v35
    %v337 = vunpack.c.h.b16 %v35
    %v338 = vunpack.c.l.b16 %v36
    %v339 = vunpack.c.h.b16 %v36
    %v340 = vunpack.c.l.b16 %v37
    %v341 = vunpack.c.h.b16 %v37
    %v342 = vunpack.c.l.b16 %v38
    %v343 = vunpack.c.h.b16 %v38
    %v344 = vunpack.c.l.b16 %v39
    %v345 = vunpack.c.h.b16 %v39
    %v346 = vunpack.c.l.b16 %v40
    %v347 = vunpack.c.h.b16 %v40
    %v348 = vunpack.c.l.b16 %v41
    %v349 = vunpack.c.h.b16 %v41
    %v350 = vunpack.c.l.b16 %v42
    %v351 = vunpack.c.h.b16 %v42
    %v352 = vunpack.c.l.b16 %v43
    %v353 = vunpack.c.h.b16 %v43
    %v354 = vunpack.c.l.b16 %v44
    %v355 = vunpack.c.h.b16 %v44
    %v356 = vunpack.c.l.b16 %v45
    %v357 = vunpack.c.h.b16 %v45
    %v358 = vunpack.c.l.b16 %v46
    %v359 = vunpack.c.h.b16 %v46
    %v360 = vunpack.c.l.b16 %v47
    %v361 = vunpack.c.h.b16 %v47
    %v362 = vunpack.c.l.b16 %v48
    %v363 = vunpack.c.h.b16 %v48
    %v364 = vunpack.c.l.b16 %v49
    %v365 = vunpack.c.h.b16 %v49
    %v366 = vunpack.c.l.b16 %v50
    %v367 = vunpack.c.h.b16 %v50
    %v368 = vunpack.c.l.b16 %v51
    %v369 = vunpack.c.h.b16 %v51
    %v370 = vunpack.c.l.b16 %v52
    %v371 = vunpack.c.h.b16 %v52
    %v372 = vunpack.c.l.b16 %v53
    %v373 = vunpack.c.h.b16 %v53
    %v374 = vunpack.c.l.b16 %v54
    %v375 = vunpack.c.h.b16 %v54
    %v376 = vunpack.c.l.b16 %v55
    %v377 = vunpack.c.h.b16 %v55
    %v378 = vunpack.c.l.b16 %v56
    %v379 = vunpack.c.h.b16 %v56
    %v380 = vunpack.c.l.b16 %v57
    %v381 = vunpack.c.h.b16 %v57
    %v382 = vunpack.c.l.b16 %v58
    %v383 = vunpack.c.h.b16 %v58
    %v384 = vunpack.c.l.b16 %v59
    %v385 = vunpack.c.h.b16 %v59
    %v386 = vunpack.c.l.b16 %v60
    %v387 = vunpack.c.h.b16 %v60
    %v388 = vunpack.c.l.b16 %v61
    %v389 = vunpack.c.h.b16 %v61
    %v390 = vunpack.c.l.b16 %v62
    %v391 = vunpack.c.h.b16 %v62
    %v392 = vunpack.c.l.b16 %v63
    %v393 = vunpack.c.h.b16 %v63
    %v394 = vunpack.c.l.b16 %v64
    %v395 = vunpack.c.h.b16 %v64
    %v396 = vunpack.c.l.b16 %v65
    %v397 = vunpack.c.h.b16 %v65
    %v398 = vunpack.c.l.b16 %v66
    %v399 = vunpack.c.h.b16 %v66
    %v400 = vunpack.c.l.b16 %v67
    %v401 = vunpack.c.h.b16 %v67
    %v402 = vunpack.c.l.b16 %v68
    %v403 = vunpack.c.h.b16 %v68
    %v404 = vunpack.c.l.b16 %v69
    %v405 = vunpack.c.h.b16 %v69
    %v406 = vunpack.c.l.b16 %v70
    %v407 = vunpack.c.h.b16 %v70
    %v408 = vunpack.c.l.b16 %v71
    %v409 = vunpack.c.h.b16 %v71
    %v410 = vunpack.c.l.b16 %v72
    %v411 = vunpack.c.h.b16 %v72
    %v412 = vunpack.c.l.b16 %v73
    %v413 = vunpack.c.h.b16 %v73
    %v414 = vunpack.c.l.b16 %v74
    %v415 = vunpack.c.h.b16 %v74
    %v416 = vunpack.c.l.b16 %v75
    %v417 = vunpack.c.h.b16 %v75
    %v418 = vunpack.c.l.b16 %v76
    %v419 = vunpack.c.h.b16 %v76
    %v420 = vunpack.c.l.b16 %v77
    %v421 = vunpack.c.h.b16 %v77
    %v422 = vunpack.c.l.b16 %v78
    %v423 = vunpack.c.h.b16 %v78
    %v424 = vunpack.c.l.b16 %v79
    %v425 = vunpack.c.h.b16 %v79
    %v426 = vunpack.c.l.b16 %v80
    %v427 = vunpack.c.h.b16 %v80
    %v428 = vunpack.c.l.b16 %v81
    %v429 = vunpack.c.h.b16 %v81
    %v430 = vunpack.c.l.b16 %v82
    %v431 = vunpack.c.h.b16 %v82
    %v432 = vunpack.c.l.b16 %v83
    %v433 = vunpack.c.h.b16 %v83
    %v434 = vunpack.c.l.b16 %v84
    %v435 = vunpack.c.h.b16 %v84
    %v436 = vunpack.c.l.b16 %v85
    %v437 = vunpack.c.h.b16 %v85
    %v438 = vunpack.c.l.b16 %v86
    %v439 = vunpack.c.h.b16 %v86
    %v440 = vunpack.c.l.b16 %v87
    %v441 = vunpack.c.h.b16 %v87
    %v442 = vunpack.c.l.b16 %v88
    %v443 = vunpack.c.h.b16 %v88
    %v444 = vunpack.c.l.b16 %v89
    %v445 = vunpack.c.h.b16 %v89
    %v446 = vunpack.c.l.b16 %v90
    %v447 = vunpack.c.h.b16 %v90
    %v448 = vunpack.c.l.b16 %v91
    %v449 = vunpack.c.h.b16 %v91
    %v450 = vunpack.c.l.b16 %v92
    %v451 = vunpack.c.h.b16 %v92
    %v452 = vunpack.c.l.b16 %v93
    %v453 = vunpack.c.h.b16 %v93
    %v454 = vunpack.c.l.b16 %v94
    %v455 = vunpack.c.h.b16 %v94
    %v456 = vunpack.c.l.b16 %v95
    %v457 = vunpack.c.h.b16 %v95
    %v458 = vunpack.c.l.b16 %v96
    %v459 = vunpack.c.h.b16 %v96
    %v460 = vunpack.c.l.b16 %v97
    %v461 = vunpack.c.h.b16 %v97
    %v462 = vunpack.c.l.b16 %v98
    %v463 = vunpack.c.h.b16 %v98
    %v464 = vunpack.c.l.b16 %v99
    %v465 = vunpack.c.h.b16 %v99
    %v466 = vunpack.c.l.b16 %v100
    %v467 = vunpack.c.h.b16 %v100
    %v468 = vunpack.c.l.b16 %v101
    %v469 = vunpack.c.h.b16 %v101
    %v470 = vunpack.c.l.b16 %v102
    %v471 = vunpack.c.h.b16 %v102
    %v472 = vunpack.c.l.b16 %v103
    %v473 = vunpack.c.h.b16 %v103
    %v474 = vunpack.c.l.b16 %v104
    %v475 = vunpack.c.h.b16 %v104
    %v476 = vunpack.c.l.b16 %v105
    %v477 = vunpack.c.h.b16 %v105
    %v478 = vunpack.c.l.b16 %v106
    %v479 = vunpack.c.h.b16 %v106
    %v480 = vunpack.c.l.b16 %v107
    %v481 = vunpack.c.h.b16 %v107
    %v482 = vunpack.c.l.b16 %v108
    %v483 = vunpack.c.h.b16 %v108
    %v484 = vunpack.c.l.b16 %v109
    %v485 = vunpack.c.h.b16 %v109
    %v486 = vunpack.c.l.b16 %v110
    %v487 = vunpack.c.h.b16 %v110
    %v488 = vunpack.c.l.b16 %v111
    %v489 = vunpack.c.h.b16 %v111
    %v490 = vunpack.c.l.b16 %v112
    %v491 = vunpack.c.h.b16 %v112
    %v492 = vunpack.c.l.b16 %v113
    %v493 = vunpack.c.h.b16 %v113
    %v494 = vunpack.c.l.b16 %v114
    %v495 = vunpack.c.h.b16 %v114
    %v496 = vunpack.c.l.b16 %v115
    %v497 = vunpack.c.h.b16 %v115
    %v498 = vunpack.c.l.b16 %v116
    %v499 = vunpack.c.h.b16 %v116
    %v500 = vunpack.c.l.b16 %v117
    %v501 = vunpack.c.h.b16 %v117
    %v502 = vunpack.c.l.b16 %v118
    %v503 = vunpack.c.h.b16 %v118
    %v504 = vunpack.c.l.b16 %v119
    %v505 = vunpack.c.h.b16 %v119
    %v506 = vunpack.c.l.b16 %v120
    %v507 = vunpack.c.h.b16 %v120
    %v508 = vunpack.c.l.b16 %v121
    %v509 = vunpack.c.h.b16 %v121
    %v510 = vunpack.c.l.b16 %v122
    %v511 = vunpack.c.h.b16 %v122
    %v512 = vunpack.c.l.b16 %v123
    %v513 = vunpack.c.h.b16 %v123
    %v514 = vunpack.c.l.b16 %v124
    %v515 = vunpack.c.h.b16 %v124
    %v516 = vunpack.c.l.b16 %v125
    %v517 = vunpack.c.h.b16 %v125
    %v518 = vunpack.c.l.b16 %v126
    %v519 = vunpack.c.h.b16 %v126
    %v520 = vunpack.c.l.b16 %v127
    %v521 = vunpack.c.h.b16 %v127
    %v522 = vunpack.c.l.b16 %v128
    %v523 = vunpack.c.h.b16 %v128
    %v524 = vunpack.c.l.b16 %v129
    %v525 = vunpack.c.h.b16 %v129
    %v526 = vunpack.c.l.b16 %v130
    %v527 = vunpack.c.h.b16 %v130
    %v528 = vunpack.c.l.b16 %v131
    %v529 = vunpack.c.h.b16 %v131
    %v530 = vunpack.c.l.b16 %v132
    %v531 = vunpack.c.h.b16 %v132
    %v532 = vunpack.c.l.b16 %v133
    %v533 = vunpack.c.h.b16 %v133
    %v534 = vunpack.c.l.b16 %v134
    %v535 = vunpack.c.h.b16 %v134
    %v536 = vunpack.c.l.b16 %v135
    %v537 = vunpack.c.h.b16 %v135
    %v538 = vunpack.c.l.b16 %v136
    %v539 = vunpack.c.h.b16 %v136
    %v540 = vunpack.c.l.b16 %v137
    %v541 = vunpack.c.h.b16 %v137
    %v542 = vunpack.c.l.b16 %v138
    %v543 = vunpack.c.h.b16 %v138
    %v544 = vunpack.c.l.b16 %v139
    %v545 = vunpack.c.h.b16 %v139
    %v546 = vunpack.c.l.b16 %v140
    %v547 = vunpack.c.h.b16 %v140
    %v548 = vunpack.c.l.b16 %v141
    %v549 = vunpack.c.h.b16 %v141
    %v550 = vunpack.c.l.b16 %v142
    %v551 = vunpack.c.h.b16 %v142
    %v552 = vunpack.c.l.b16 %v143
    %v553 = vunpack.c.h.b16 %v143
    %v554 = vpack.c.b16 %v300, %v298
    %v555 = vpack.c.b16 %v301, %v299
    %v556 = vpack.c.b16 %v304, %v302
    %v557 = vpack.c.b16 %v305, %v303
    %v558 = vpack.c.b16 %v308, %v306
    %v559 = vpack.c.b16 %v309, %v307
    %v560 = vpack.c.b16 %v312, %v310
    %v561 = vpack.c.b16 %v313, %v311
    %v562 = vpack.c.b16 %v316, %v314
    %v563 = vpack.c.b16 %v317, %v315
    %v564 = vpack.c.b16 %v320, %v318
    %v565 = vpack.c.b16 %v321, %v319
    %v566 = vpack.c.b16 %v324, %v322
    %v567 = vpack.c.b16 %v325, %v323
    %v568 = vpack.c.b16 %v328, %v326
    %v569 = vpack.c.b16 %v329, %v327
    %v570 = vpack.c.b16 %v332, %v330
    %v571 = vpack.c.b16 %v333, %v331
    %v572 = vpack.c.b16 %v336, %v334
    %v573 = vpack.c.b16 %v337, %v335
    %v574 = vpack.c.b16 %v340, %v338
    %v575 = vpack.c.b16 %v341, %v339
    %v576 = vpack.c.b16 %v344, %v342
    %v577 = vpack.c.b16 %v345, %v343
    %v578 = vpack.c.b16 %v348, %v346
    %v579 = vpack.c.b16 %v349, %v347
    %v580 = vpack.c.b16 %v352, %v350
    %v581 = vpack.c.b16 %v353, %v351
    %v582 = vpack.c.b16 %v356, %v354
    %v583 = vpack.c.b16 %v357, %v355
    %v584 = vpack.c.b16 %v360, %v358
    %v585 = vpack.c.b16 %v361, %v359
    %v586 = vpack.c.b16 %v364, %v362
    %v587 = vpack.c.b16 %v365, %v363
    %v588 = vpack.c.b16 %v368, %v366
    %v589 = vpack.c.b16 %v369, %v367
    %v590 = vpack.c.b16 %v372, %v370
    %v591 = vpack.c.b16 %v373, %v371
    %v592 = vpack.c.b16 %v376, %v374
    %v593 = vpack.c.b16 %v377, %v375
    %v594 = vpack.c.b16 %v380, %v378
    %v595 = vpack.c.b16 %v381, %v379
    %v596 = vpack.c.b16 %v384, %v382
    %v597 = vpack.c.b16 %v385, %v383
    %v598 = vpack.c.b16 %v388, %v386
    %v599 = vpack.c.b16 %v389, %v387
    %v600 = vpack.c.b16 %v392, %v390
    %v601 = vpack.c.b16 %v393, %v391
    %v602 = vpack.c.b16 %v396, %v394
    %v603 = vpack.c.b16 %v397, %v395
    %v604 = vpack.c.b16 %v400, %v398
    %v605 = vpack.c.b16 %v401, %v399
    %v606 = vpack.c.b16 %v404, %v402
    %v607 = vpack.c.b16 %v405, %v403
    %v608 = vpack.c.b16 %v408, %v406
    %v609 = vpack.c.b16 %v409, %v407
    %v610 = vpack.c.b16 %v412, %v410
    %v611 = vpack.c.b16 %v413, %v411
    %v612 = vpack.c.b16 %v416, %v414
    %v613 = vpack.c.b16 %v417, %v415
    %v614 = vpack.c.b16 %v420, %v418
    %v615 = vpack.c.b16 %v421, %v419
    %v616 = vpack.c.b16 %v424, %v422
    %v617 = vpack.c.b16 %v425, %v423
    %v618 = vpack.c.b16 %v428, %v426
    %v619 = vpack.c.b16 %v429, %v427
    %v620 = vpack.c.b16 %v432, %v430
    %v621 = vpack.c.b16 %v433, %v431
    %v622 = vpack.c.b16 %v436, %v434
    %v623 = vpack.c.b16 %v437, %v435
    %v624 = vpack.c.b16 %v440, %v438
    %v625 = vpack.c.b16 %v441, %v439
    %v626 = vpack.c.b16 %v444, %v442
    %v627 = vpack.c.b16 %v445, %v443
    %v628 = vpack.c.b16 %v448, %v446
    %v629 = vpack.c.b16 %v449, %v447
    %v630 = vpack.c.b16 %v452, %v450
    %v631 = vpack.c.b16 %v453, %v451
    %v632 = vpack.c.b16 %v456, %v454
    %v633 = vpack.c.b16 %v457, %v455
    %v634 = vpack.c.b16 %v460, %v458
    %v635 = vpack.c.b16 %v461, %v459
    %v636 = vpack.c.b16 %v464, %v462
    %v637 = vpack.c.b16 %v465, %v463
    %v638 = vpack.c.b16 %v468, %v466
    %v639 = vpack.c.b16 %v469, %v467
    %v640 = vpack.c.b16 %v472, %v470
    %v641 = vpack.c.b16 %v473, %v471
    %v642 = vpack.c.b16 %v476, %v474
    %v643 = vpack.c.b16 %v477, %v475
    %v644 = vpack.c.b16 %v480, %v478
    %v645 = vpack.c.b16 %v481, %v479
    %v646 = vpack.c.b16 %v484, %v482
    %v647 = vpack.c.b16 %v485, %v483
    %v648 = vpack.c.b16 %v488, %v486
    %v649 = vpack.c.b16 %v489, %v487
    %v650 = vpack.c.b16 %v492, %v490
    %v651 = vpack.c.b16 %v493, %v491
    %v652 = vpack.c.b16 %v496, %v494
    %v653 = vpack.c.b16 %v497, %v495
    %v654 = vpack.c.b16 %v500, %v498
    %v655 = vpack.c.b16 %v501, %v499
    %v656 = vpack.c.b16 %v504, %v502
    %v657 = vpack.c.b16 %v505, %v503
    %v658 = vpack.c.b16 %v508, %v506
    %v659 = vpack.c.b16 %v509, %v507
    %v660 = vpack.c.b16 %v512, %v510
    %v661 = vpack.c.b16 %v513, %v511
    %v662 = vpack.c.b16 %v516, %v514
    %v663 = vpack.c.b16 %v517, %v515
    %v664 = vpack.c.b16 %v520, %v518
    %v665 = vpack.c.b16 %v521, %v519
    %v666 = vpack.c.b16 %v524, %v522
    %v667 = vpack.c.b16 %v525, %v523
    %v668 = vpack.c.b16 %v528, %v526
    %v669 = vpack.c.b16 %v529, %v527
    %v670 = vpack.c.b16 %v532, %v530
    %v671 = vpack.c.b16 %v533, %v531
    %v672 = vpack.c.b16 %v536, %v534
    %v673 = vpack.c.b16 %v537, %v535
    %v674 = vpack.c.b16 %v540, %v538
    %v675 = vpack.c.b16 %v541, %v539
    %v676 = vpack.c.b16 %v544, %v542
    %v677 = vpack.c.b16 %v545, %v543
    %v678 = vpack.c.b16 %v548, %v546
    %v679 = vpack.c.b16 %v549, %v547
    %v680 = vpack.c.b16 %v552, %v550
    %v681 = vpack.c.b16 %v553, %v551
    %v765 = vunpack.c.l.b16 %v144
    %v766 = vunpack.c.l.b16 %v145
    %v767 = vunpack.c.l.b16 %v146
    %v768 = vunpack.c.l.b16 %v147
    %v769 = vunpack.c.l.b16 %v148
    %v770 = vunpack.c.l.b16 %v149
    %v771 = vunpack.c.l.b16 %v150
    %v772 = vunpack.c.l.b16 %v151
    %v773 = vunpack.c.l.b16 %v152
    %v774 = vunpack.c.l.b16 %v153
    %v775 = vunpack.c.l.b16 %v154
    %v776 = vunpack.c.l.b16 %v155
    %v777 = vunpack.c.l.b16 %v156
    %v778 = vunpack.c.l.b16 %v157
    %v779 = vunpack.c.l.b16 %v158
    %v780 = vunpack.c.l.b16 %v159
    %v781 = vunpack.c.l.b16 %v160
    %v782 = vunpack.c.l.b16 %v161
    %v783 = vunpack.c.l.b16 %v162
    %v784 = vpack.c.b16 %v766, %v765
    %v785 = vpack.c.b16 %v768, %v767
    %v786 = vpack.c.b16 %v770, %v769
    %v787 = vpack.c.b16 %v772, %v771
    %v788 = vpack.c.b16 %v774, %v773
    %v789 = vpack.c.b16 %v776, %v775
    %v790 = vpack.c.b16 %v778, %v777
    %v791 = vpack.c.b16 %v780, %v779
    %v792 = vpack.c.b16 %v782, %v781
    %v793 = vpack.c.b16 %v783, %v783
    %vm803 = vcmask 154624
    %v805 = vsel %vm803, %v555, 0
    %v808 = vsel %vm803, %v557, 0
    %v811 = vsel %vm803, %v559, 0
    %v814 = vsel %vm803, %v561, 0
    %v817 = vsel %vm803, %v563, 0
    %v820 = vsel %vm803, %v565, 0
    %v823 = vsel %vm803, %v567, 0
    %v826 = vsel %vm803, %v569, 0
    %v829 = vsel %vm803, %v571, 0
    %v832 = vsel %vm803, %v573, 0
    %v835 = vsel %vm803, %v575, 0
    %v838 = vsel %vm803, %v577, 0
    %v841 = vsel %vm803, %v579, 0
    %v844 = vsel %vm803, %v581, 0
    %v847 = vsel %vm803, %v583, 0
    %v850 = vsel %vm803, %v585, 0
    %v853 = vsel %vm803, %v587, 0
    %v856 = vsel %vm803, %v589, 0
    %v859 = vsel %vm803, %v591, 0
    %v862 = vsel %vm803, %v593, 0
    %v865 = vsel %vm803, %v595, 0
    %v868 = vsel %vm803, %v597, 0
    %v871 = vsel %vm803, %v599, 0
    %v874 = vsel %vm803, %v601, 0
    %v877 = vsel %vm803, %v603, 0
    %v880 = vsel %vm803, %v605, 0
    %v883 = vsel %vm803, %v607, 0
    %v886 = vsel %vm803, %v609, 0
    %v889 = vsel %vm803, %v611, 0
    %v892 = vsel %vm803, %v613, 0
    %v895 = vsel %vm803, %v615, 0
    %v898 = vsel %vm803, %v617, 0
    %v901 = vsel %vm803, %v619, 0
    %v904 = vsel %vm803, %v621, 0
    %v907 = vsel %vm803, %v623, 0
    %v910 = vsel %vm803, %v625, 0
    %v913 = vsel %vm803, %v627, 0
    %v916 = vsel %vm803, %v629, 0
    %v919 = vsel %vm803, %v631, 0
    %v922 = vsel %vm803, %v633, 0
    %v925 = vsel %vm803, %v635, 0
    %v928 = vsel %vm803, %v637, 0
    %v931 = vsel %vm803, %v639, 0
    %v934 = vsel %vm803, %v641, 0
    %v937 = vsel %vm803, %v643, 0
    %v940 = vsel %vm803, %v645, 0
    %v943 = vsel %vm803, %v647, 0
    %v946 = vsel %vm803, %v649, 0
    %v949 = vsel %vm803, %v651, 0
    %v952 = vsel %vm803, %v653, 0
    %v955 = vsel %vm803, %v655, 0
    %v958 = vsel %vm803, %v657, 0
    %v961 = vsel %vm803, %v659, 0
    %v964 = vsel %vm803, %v661, 0
    %v967 = vsel %vm803, %v663, 0
    %v970 = vsel %vm803, %v665, 0
    %v973 = vsel %vm803, %v667, 0
    %v976 = vsel %vm803, %v669, 0
    %v979 = vsel %vm803, %v671, 0
    %v982 = vsel %vm803, %v673, 0
    %v985 = vsel %vm803, %v675, 0
    %v988 = vsel %vm803, %v677, 0
    %v991 = vsel %vm803, %v679, 0
    %v994 = vsel %vm803, %v681, 0
    %vm996 = vcmask 1040384
    %vm997 = vcmask 1041408
    %v998 = vsel %vm996, 4294967295, 65535
    %v999 = vsel %vm997, %v998, 0
    %v1001 = vand.u32 %v793, %v999
    %1003 = vmatprep.subr.bf16.mxu0 0
    %1004 = vmatpush1.bf16.msra.mxu0 %v784
    %1005 = vmatprep.subr.bf16.mxu0 0
    %1006 = vmatpush1.bf16.msra.mxu0 %v785
    %1007 = vmatprep.subr.bf16.mxu0 0
    %1008 = vmatpush1.bf16.msra.mxu0 %v786
    %1009 = vmatprep.subr.bf16.mxu0 0
    %1010 = vmatpush1.bf16.msra.mxu0 %v787
    %1011 = vmatprep.subr.bf16.mxu0 0
    %1012 = vmatpush1.bf16.msra.mxu0 %v788
    %1013 = vmatprep.subr.bf16.mxu0 0
    %1014 = vmatpush1.bf16.msra.mxu0 %v789
    %1015 = vmatprep.subr.bf16.mxu0 0
    %1016 = vmatpush1.bf16.msra.mxu0 %v790
    %1017 = vmatprep.subr.bf16.mxu0 0
    %1018 = vmatpush1.bf16.msra.mxu0 %v791
    %1019 = vmatprep.subr.bf16.mxu0 0
    %1020 = vmatpush1.bf16.msra.mxu0 %v792
    %1021 = vmatprep.subr.bf16.mxu0 0
    %1022 = vmatpush1.bf16.msra.mxu0 %v1001
    %1023 = vmatprep.subr.bf16.mxu0 0
    %1024 = vmatpush1.bf16.msra.mxu0 0
    %1025 = vmatprep.subr.bf16.mxu0 0
    %1026 = vmatpush1.bf16.msra.mxu0 0
    %1027 = vmatprep.subr.bf16.mxu0 0
    %1028 = vmatpush1.bf16.msra.mxu0 0
    %1029 = vmatprep.subr.bf16.mxu0 0
    %1030 = vmatpush1.bf16.msra.mxu0 0
    %1031 = vmatprep.subr.bf16.mxu0 0
    %1032 = vmatpush1.bf16.msra.mxu0 0
    %1033 = vmatprep.subr.bf16.mxu0 0
    %1034 = vmatpush1.bf16.msra.mxu0 0
    %1035 = vmatprep.mubr.bf16.mxu0 %v805
    %1036 = vmatmul.mubr.bf16.gmra.mrb[0].mxu0 %v554
    %v1037 = vpop.f32.mrb[0].mxu0
    %v1038 = vadd.f32 %v168, %v1037
    %v1039 = vpop.f32.mrb[0].mxu0
    %v1040 = vpop.f32.mrb[0].mxu0
    %v1041 = vadd.f32 %v168, %v1040
    %v1042 = vpop.f32.mrb[0].mxu0
    %1043 = vmatprep.mubr.bf16.mxu0 %v808
    %1044 = vmatmul.mubr.bf16.gmra.mrb[0].mxu0 %v556
    %v1045 = vpop.f32.mrb[0].mxu0
    %v1046 = vadd.f32 %v168, %v1045
    %v1047 = vpop.f32.mrb[0].mxu0
    %v1048 = vpop.f32.mrb[0].mxu0
    %v1049 = vadd.f32 %v168, %v1048
    %v1050 = vpop.f32.mrb[0].mxu0
    %1051 = vmatprep.mubr.bf16.mxu0 %v811
    %1052 = vmatmul.mubr.bf16.gmra.mrb[0].mxu0 %v558
    %v1053 = vpop.f32.mrb[0].mxu0
    %v1054 = vadd.f32 %v168, %v1053
    %v1055 = vpop.f32.mrb[0].mxu0
    %v1056 = vpop.f32.mrb[0].mxu0
    %v1057 = vadd.f32 %v168, %v1056
    %v1058 = vpop.f32.mrb[0].mxu0
    %1059 = vmatprep.mubr.bf16.mxu0 %v814
    %1060 = vmatmul.mubr.bf16.gmra.mrb[0].mxu0 %v560
    %v1061 = vpop.f32.mrb[0].mxu0
    %v1062 = vadd.f32 %v168, %v1061
    %v1063 = vpop.f32.mrb[0].mxu0
    %v1064 = vpop.f32.mrb[0].mxu0
    %v1065 = vadd.f32 %v168, %v1064
    %v1066 = vpop.f32.mrb[0].mxu0
    %1067 = vmatprep.mubr.bf16.mxu0 %v817
    %1068 = vmatmul.mubr.bf16.gmra.mrb[0].mxu0 %v562
    %v1069 = vpop.f32.mrb[0].mxu0
    %v1070 = vadd.f32 %v168, %v1069
    %v1071 = vpop.f32.mrb[0].mxu0
    %v1072 = vpop.f32.mrb[0].mxu0
    %v1073 = vadd.f32 %v168, %v1072
    %v1074 = vpop.f32.mrb[0].mxu0
    %1075 = vmatprep.mubr.bf16.mxu0 %v820
    %1076 = vmatmul.mubr.bf16.gmra.mrb[0].mxu0 %v564
    %v1077 = vpop.f32.mrb[0].mxu0
    %v1078 = vadd.f32 %v168, %v1077
    %v1079 = vpop.f32.mrb[0].mxu0
    %v1080 = vpop.f32.mrb[0].mxu0
    %v1081 = vadd.f32 %v168, %v1080
    %v1082 = vpop.f32.mrb[0].mxu0
    %1083 = vmatprep.mubr.bf16.mxu0 %v823
    %1084 = vmatmul.mubr.bf16.gmra.mrb[0].mxu0 %v566
    %v1085 = vpop.f32.mrb[0].mxu0
    %v1086 = vadd.f32 %v168, %v1085
    %v1087 = vpop.f32.mrb[0].mxu0
    %v1088 = vpop.f32.mrb[0].mxu0
    %v1089 = vadd.f32 %v168, %v1088
    %v1090 = vpop.f32.mrb[0].mxu0
    %1091 = vmatprep.mubr.bf16.mxu0 %v826
    %1092 = vmatmul.mubr.bf16.gmra.mrb[0].mxu0 %v568
    %v1093 = vpop.f32.mrb[0].mxu0
    %v1094 = vadd.f32 %v168, %v1093
    %v1095 = vpop.f32.mrb[0].mxu0
    %v1096 = vpop.f32.mrb[0].mxu0
    %v1097 = vadd.f32 %v168, %v1096
    %v1098 = vpop.f32.mrb[0].mxu0
    %1099 = vmatprep.mubr.bf16.mxu0 %v829
    %1100 = vmatmul.mubr.bf16.gmra.mrb[0].mxu0 %v570
    %v1101 = vpop.f32.mrb[0].mxu0
    %v1102 = vadd.f32 %v168, %v1101
    %v1103 = vpop.f32.mrb[0].mxu0
    %v1104 = vpop.f32.mrb[0].mxu0
    %v1105 = vadd.f32 %v168, %v1104
    %v1106 = vpop.f32.mrb[0].mxu0
    %1107 = vmatprep.mubr.bf16.mxu0 %v832
    %1108 = vmatmul.mubr.bf16.gmra.mrb[0].mxu0 %v572
    %v1109 = vpop.f32.mrb[0].mxu0
    %v1110 = vadd.f32 %v168, %v1109
    %v1111 = vpop.f32.mrb[0].mxu0
    %v1112 = vpop.f32.mrb[0].mxu0
    %v1113 = vadd.f32 %v168, %v1112
    %v1114 = vpop.f32.mrb[0].mxu0
    %1115 = vmatprep.mubr.bf16.mxu0 %v835
    %1116 = vmatmul.mubr.bf16.gmra.mrb[0].mxu0 %v574
    %v1117 = vpop.f32.mrb[0].mxu0
    %v1118 = vadd.f32 %v168, %v1117
    %v1119 = vpop.f32.mrb[0].mxu0
    %v1120 = vpop.f32.mrb[0].mxu0
    %v1121 = vadd.f32 %v168, %v1120
    %v1122 = vpop.f32.mrb[0].mxu0
    %1123 = vmatprep.mubr.bf16.mxu0 %v838
    %1124 = vmatmul.mubr.bf16.gmra.mrb[0].mxu0 %v576
    %v1125 = vpop.f32.mrb[0].mxu0
    %v1126 = vadd.f32 %v168, %v1125
    %v1127 = vpop.f32.mrb[0].mxu0
    %v1128 = vpop.f32.mrb[0].mxu0
    %v1129 = vadd.f32 %v168, %v1128
    %v1130 = vpop.f32.mrb[0].mxu0
    %1131 = vmatprep.mubr.bf16.mxu0 %v841
    %1132 = vmatmul.mubr.bf16.gmra.mrb[0].mxu0 %v578
    %v1133 = vpop.f32.mrb[0].mxu0
    %v1134 = vadd.f32 %v168, %v1133
    %v1135 = vpop.f32.mrb[0].mxu0
    %v1136 = vpop.f32.mrb[0].mxu0
    %v1137 = vadd.f32 %v168, %v1136
    %v1138 = vpop.f32.mrb[0].mxu0
    %1139 = vmatprep.mubr.bf16.mxu0 %v844
    %1140 = vmatmul.mubr.bf16.gmra.mrb[0].mxu0 %v580
    %v1141 = vpop.f32.mrb[0].mxu0
    %v1142 = vadd.f32 %v168, %v1141
    %v1143 = vpop.f32.mrb[0].mxu0
    %v1144 = vpop.f32.mrb[0].mxu0
    %v1145 = vadd.f32 %v168, %v1144
    %v1146 = vpop.f32.mrb[0].mxu0
    %1147 = vmatprep.mubr.bf16.mxu0 %v847
    %1148 = vmatmul.mubr.bf16.gmra.mrb[0].mxu0 %v582
    %v1149 = vpop.f32.mrb[0].mxu0
    %v1150 = vadd.f32 %v168, %v1149
    %v1151 = vpop.f32.mrb[0].mxu0
    %v1152 = vpop.f32.mrb[0].mxu0
    %v1153 = vadd.f32 %v168, %v1152
    %v1154 = vpop.f32.mrb[0].mxu0
    %1155 = vmatprep.mubr.bf16.mxu0 %v850
    %1156 = vmatmul.mubr.bf16.gmra.mrb[0].mxu0 %v584
    %v1157 = vpop.f32.mrb[0].mxu0
    %v1158 = vadd.f32 %v168, %v1157
    %v1159 = vpop.f32.mrb[0].mxu0
    %v1160 = vpop.f32.mrb[0].mxu0
    %v1161 = vadd.f32 %v168, %v1160
    %v1162 = vpop.f32.mrb[0].mxu0
    %1163 = vmatprep.mubr.bf16.mxu0 %v853
    %1164 = vmatmul.mubr.bf16.gmra.mrb[0].mxu0 %v586
    %v1165 = vpop.f32.mrb[0].mxu0
    %v1166 = vadd.f32 %v168, %v1165
    %v1167 = vpop.f32.mrb[0].mxu0
    %v1168 = vpop.f32.mrb[0].mxu0
    %v1169 = vadd.f32 %v168, %v1168
    %v1170 = vpop.f32.mrb[0].mxu0
    %1171 = vmatprep.mubr.bf16.mxu0 %v856
    %1172 = vmatmul.mubr.bf16.gmra.mrb[0].mxu0 %v588
    %v1173 = vpop.f32.mrb[0].mxu0
    %v1174 = vadd.f32 %v168, %v1173
    %v1175 = vpop.f32.mrb[0].mxu0
    %v1176 = vpop.f32.mrb[0].mxu0
    %v1177 = vadd.f32 %v168, %v1176
    %v1178 = vpop.f32.mrb[0].mxu0
    %1179 = vmatprep.mubr.bf16.mxu0 %v859
    %1180 = vmatmul.mubr.bf16.gmra.mrb[0].mxu0 %v590
    %v1181 = vpop.f32.mrb[0].mxu0
    %v1182 = vadd.f32 %v168, %v1181
    %v1183 = vpop.f32.mrb[0].mxu0
    %v1184 = vpop.f32.mrb[0].mxu0
    %v1185 = vadd.f32 %v168, %v1184
    %v1186 = vpop.f32.mrb[0].mxu0
    %1187 = vmatprep.mubr.bf16.mxu0 %v862
    %1188 = vmatmul.mubr.bf16.gmra.mrb[0].mxu0 %v592
    %v1189 = vpop.f32.mrb[0].mxu0
    %v1190 = vadd.f32 %v168, %v1189
    %v1191 = vpop.f32.mrb[0].mxu0
    %v1192 = vpop.f32.mrb[0].mxu0
    %v1193 = vadd.f32 %v168, %v1192
    %v1194 = vpop.f32.mrb[0].mxu0
    %1195 = vmatprep.mubr.bf16.mxu0 %v865
    %1196 = vmatmul.mubr.bf16.gmra.mrb[0].mxu0 %v594
    %v1197 = vpop.f32.mrb[0].mxu0
    %v1198 = vadd.f32 %v168, %v1197
    %v1199 = vpop.f32.mrb[0].mxu0
    %v1200 = vpop.f32.mrb[0].mxu0
    %v1201 = vadd.f32 %v168, %v1200
    %v1202 = vpop.f32.mrb[0].mxu0
    %1203 = vmatprep.mubr.bf16.mxu0 %v868
    %1204 = vmatmul.mubr.bf16.gmra.mrb[0].mxu0 %v596
    %v1205 = vpop.f32.mrb[0].mxu0
    %v1206 = vadd.f32 %v168, %v1205
    %v1207 = vpop.f32.mrb[0].mxu0
    %v1208 = vpop.f32.mrb[0].mxu0
    %v1209 = vadd.f32 %v168, %v1208
    %v1210 = vpop.f32.mrb[0].mxu0
    %1211 = vmatprep.mubr.bf16.mxu0 %v871
    %1212 = vmatmul.mubr.bf16.gmra.mrb[0].mxu0 %v598
    %v1213 = vpop.f32.mrb[0].mxu0
    %v1214 = vadd.f32 %v168, %v1213
    %v1215 = vpop.f32.mrb[0].mxu0
    %v1216 = vpop.f32.mrb[0].mxu0
    %v1217 = vadd.f32 %v168, %v1216
    %v1218 = vpop.f32.mrb[0].mxu0
    %1219 = vmatprep.mubr.bf16.mxu0 %v874
    %1220 = vmatmul.mubr.bf16.gmra.mrb[0].mxu0 %v600
    %v1221 = vpop.f32.mrb[0].mxu0
    %v1222 = vadd.f32 %v168, %v1221
    %v1223 = vpop.f32.mrb[0].mxu0
    %v1224 = vpop.f32.mrb[0].mxu0
    %v1225 = vadd.f32 %v168, %v1224
    %v1226 = vpop.f32.mrb[0].mxu0
    %1227 = vmatprep.mubr.bf16.mxu0 %v877
    %1228 = vmatmul.mubr.bf16.gmra.mrb[0].mxu0 %v602
    %v1229 = vpop.f32.mrb[0].mxu0
    %v1230 = vadd.f32 %v168, %v1229
    %v1231 = vpop.f32.mrb[0].mxu0
    %v1232 = vpop.f32.mrb[0].mxu0
    %v1233 = vadd.f32 %v168, %v1232
    %v1234 = vpop.f32.mrb[0].mxu0
    %1235 = vmatprep.mubr.bf16.mxu0 %v880
    %1236 = vmatmul.mubr.bf16.gmra.mrb[0].mxu0 %v604
    %v1237 = vpop.f32.mrb[0].mxu0
    %v1238 = vadd.f32 %v168, %v1237
    %v1239 = vpop.f32.mrb[0].mxu0
    %v1240 = vpop.f32.mrb[0].mxu0
    %v1241 = vadd.f32 %v168, %v1240
    %v1242 = vpop.f32.mrb[0].mxu0
    %1243 = vmatprep.mubr.bf16.mxu0 %v883
    %1244 = vmatmul.mubr.bf16.gmra.mrb[0].mxu0 %v606
    %v1245 = vpop.f32.mrb[0].mxu0
    %v1246 = vadd.f32 %v168, %v1245
    %v1247 = vpop.f32.mrb[0].mxu0
    %v1248 = vpop.f32.mrb[0].mxu0
    %v1249 = vadd.f32 %v168, %v1248
    %v1250 = vpop.f32.mrb[0].mxu0
    %1251 = vmatprep.mubr.bf16.mxu0 %v886
    %1252 = vmatmul.mubr.bf16.gmra.mrb[0].mxu0 %v608
    %v1253 = vpop.f32.mrb[0].mxu0
    %v1254 = vadd.f32 %v168, %v1253
    %v1255 = vpop.f32.mrb[0].mxu0
    %v1256 = vpop.f32.mrb[0].mxu0
    %v1257 = vadd.f32 %v168, %v1256
    %v1258 = vpop.f32.mrb[0].mxu0
    %1259 = vmatprep.mubr.bf16.mxu0 %v889
    %1260 = vmatmul.mubr.bf16.gmra.mrb[0].mxu0 %v610
    %v1261 = vpop.f32.mrb[0].mxu0
    %v1262 = vadd.f32 %v168, %v1261
    %v1263 = vpop.f32.mrb[0].mxu0
    %v1264 = vpop.f32.mrb[0].mxu0
    %v1265 = vadd.f32 %v168, %v1264
    %v1266 = vpop.f32.mrb[0].mxu0
    %1267 = vmatprep.mubr.bf16.mxu0 %v892
    %1268 = vmatmul.mubr.bf16.gmra.mrb[0].mxu0 %v612
    %v1269 = vpop.f32.mrb[0].mxu0
    %v1270 = vadd.f32 %v168, %v1269
    %v1271 = vpop.f32.mrb[0].mxu0
    %v1272 = vpop.f32.mrb[0].mxu0
    %v1273 = vadd.f32 %v168, %v1272
    %v1274 = vpop.f32.mrb[0].mxu0
    %1275 = vmatprep.mubr.bf16.mxu0 %v895
    %1276 = vmatmul.mubr.bf16.gmra.mrb[0].mxu0 %v614
    %v1277 = vpop.f32.mrb[0].mxu0
    %v1278 = vadd.f32 %v168, %v1277
    %v1279 = vpop.f32.mrb[0].mxu0
    %v1280 = vpop.f32.mrb[0].mxu0
    %v1281 = vadd.f32 %v168, %v1280
    %v1282 = vpop.f32.mrb[0].mxu0
    %1283 = vmatprep.mubr.bf16.mxu0 %v898
    %1284 = vmatmul.mubr.bf16.gmra.mrb[0].mxu0 %v616
    %v1285 = vpop.f32.mrb[0].mxu0
    %v1286 = vadd.f32 %v168, %v1285
    %v1287 = vpop.f32.mrb[0].mxu0
    %v1288 = vpop.f32.mrb[0].mxu0
    %v1289 = vadd.f32 %v168, %v1288
    %v1290 = vpop.f32.mrb[0].mxu0
    %1291 = vmatprep.mubr.bf16.mxu0 %v901
    %1292 = vmatmul.mubr.bf16.gmra.mrb[0].mxu0 %v618
    %v1293 = vpop.f32.mrb[0].mxu0
    %v1294 = vadd.f32 %v168, %v1293
    %v1295 = vpop.f32.mrb[0].mxu0
    %v1296 = vpop.f32.mrb[0].mxu0
    %v1297 = vadd.f32 %v168, %v1296
    %v1298 = vpop.f32.mrb[0].mxu0
    %1299 = vmatprep.mubr.bf16.mxu0 %v904
    %1300 = vmatmul.mubr.bf16.gmra.mrb[0].mxu0 %v620
    %v1301 = vpop.f32.mrb[0].mxu0
    %v1302 = vadd.f32 %v168, %v1301
    %v1303 = vpop.f32.mrb[0].mxu0
    %v1304 = vpop.f32.mrb[0].mxu0
    %v1305 = vadd.f32 %v168, %v1304
    %v1306 = vpop.f32.mrb[0].mxu0
    %1307 = vmatprep.mubr.bf16.mxu0 %v907
    %1308 = vmatmul.mubr.bf16.gmra.mrb[0].mxu0 %v622
    %v1309 = vpop.f32.mrb[0].mxu0
    %v1310 = vadd.f32 %v168, %v1309
    %v1311 = vpop.f32.mrb[0].mxu0
    %v1312 = vpop.f32.mrb[0].mxu0
    %v1313 = vadd.f32 %v168, %v1312
    %v1314 = vpop.f32.mrb[0].mxu0
    %1315 = vmatprep.mubr.bf16.mxu0 %v910
    %1316 = vmatmul.mubr.bf16.gmra.mrb[0].mxu0 %v624
    %v1317 = vpop.f32.mrb[0].mxu0
    %v1318 = vadd.f32 %v168, %v1317
    %v1319 = vpop.f32.mrb[0].mxu0
    %v1320 = vpop.f32.mrb[0].mxu0
    %v1321 = vadd.f32 %v168, %v1320
    %v1322 = vpop.f32.mrb[0].mxu0
    %1323 = vmatprep.mubr.bf16.mxu0 %v913
    %1324 = vmatmul.mubr.bf16.gmra.mrb[0].mxu0 %v626
    %v1325 = vpop.f32.mrb[0].mxu0
    %v1326 = vadd.f32 %v168, %v1325
    %v1327 = vpop.f32.mrb[0].mxu0
    %v1328 = vpop.f32.mrb[0].mxu0
    %v1329 = vadd.f32 %v168, %v1328
    %v1330 = vpop.f32.mrb[0].mxu0
    %1331 = vmatprep.mubr.bf16.mxu0 %v916
    %1332 = vmatmul.mubr.bf16.gmra.mrb[0].mxu0 %v628
    %v1333 = vpop.f32.mrb[0].mxu0
    %v1334 = vadd.f32 %v168, %v1333
    %v1335 = vpop.f32.mrb[0].mxu0
    %v1336 = vpop.f32.mrb[0].mxu0
    %v1337 = vadd.f32 %v168, %v1336
    %v1338 = vpop.f32.mrb[0].mxu0
    %1339 = vmatprep.mubr.bf16.mxu0 %v919
    %1340 = vmatmul.mubr.bf16.gmra.mrb[0].mxu0 %v630
    %v1341 = vpop.f32.mrb[0].mxu0
    %v1342 = vadd.f32 %v168, %v1341
    %v1343 = vpop.f32.mrb[0].mxu0
    %v1344 = vpop.f32.mrb[0].mxu0
    %v1345 = vadd.f32 %v168, %v1344
    %v1346 = vpop.f32.mrb[0].mxu0
    %1347 = vmatprep.mubr.bf16.mxu0 %v922
    %1348 = vmatmul.mubr.bf16.gmra.mrb[0].mxu0 %v632
    %v1349 = vpop.f32.mrb[0].mxu0
    %v1350 = vadd.f32 %v168, %v1349
    %v1351 = vpop.f32.mrb[0].mxu0
    %v1352 = vpop.f32.mrb[0].mxu0
    %v1353 = vadd.f32 %v168, %v1352
    %v1354 = vpop.f32.mrb[0].mxu0
    %1355 = vmatprep.mubr.bf16.mxu0 %v925
    %1356 = vmatmul.mubr.bf16.gmra.mrb[0].mxu0 %v634
    %v1357 = vpop.f32.mrb[0].mxu0
    %v1358 = vadd.f32 %v168, %v1357
    %v1359 = vpop.f32.mrb[0].mxu0
    %v1360 = vpop.f32.mrb[0].mxu0
    %v1361 = vadd.f32 %v168, %v1360
    %v1362 = vpop.f32.mrb[0].mxu0
    %1363 = vmatprep.mubr.bf16.mxu0 %v928
    %1364 = vmatmul.mubr.bf16.gmra.mrb[0].mxu0 %v636
    %v1365 = vpop.f32.mrb[0].mxu0
    %v1366 = vadd.f32 %v168, %v1365
    %v1367 = vpop.f32.mrb[0].mxu0
    %v1368 = vpop.f32.mrb[0].mxu0
    %v1369 = vadd.f32 %v168, %v1368
    %v1370 = vpop.f32.mrb[0].mxu0
    %1371 = vmatprep.mubr.bf16.mxu0 %v931
    %1372 = vmatmul.mubr.bf16.gmra.mrb[0].mxu0 %v638
    %v1373 = vpop.f32.mrb[0].mxu0
    %v1374 = vadd.f32 %v168, %v1373
    %v1375 = vpop.f32.mrb[0].mxu0
    %v1376 = vpop.f32.mrb[0].mxu0
    %v1377 = vadd.f32 %v168, %v1376
    %v1378 = vpop.f32.mrb[0].mxu0
    %1379 = vmatprep.mubr.bf16.mxu0 %v934
    %1380 = vmatmul.mubr.bf16.gmra.mrb[0].mxu0 %v640
    %v1381 = vpop.f32.mrb[0].mxu0
    %v1382 = vadd.f32 %v168, %v1381
    %v1383 = vpop.f32.mrb[0].mxu0
    %v1384 = vpop.f32.mrb[0].mxu0
    %v1385 = vadd.f32 %v168, %v1384
    %v1386 = vpop.f32.mrb[0].mxu0
    %1387 = vmatprep.mubr.bf16.mxu0 %v937
    %1388 = vmatmul.mubr.bf16.gmra.mrb[0].mxu0 %v642
    %v1389 = vpop.f32.mrb[0].mxu0
    %v1390 = vadd.f32 %v168, %v1389
    %v1391 = vpop.f32.mrb[0].mxu0
    %v1392 = vpop.f32.mrb[0].mxu0
    %v1393 = vadd.f32 %v168, %v1392
    %v1394 = vpop.f32.mrb[0].mxu0
    %1395 = vmatprep.mubr.bf16.mxu0 %v940
    %1396 = vmatmul.mubr.bf16.gmra.mrb[0].mxu0 %v644
    %v1397 = vpop.f32.mrb[0].mxu0
    %v1398 = vadd.f32 %v168, %v1397
    %v1399 = vpop.f32.mrb[0].mxu0
    %v1400 = vpop.f32.mrb[0].mxu0
    %v1401 = vadd.f32 %v168, %v1400
    %v1402 = vpop.f32.mrb[0].mxu0
    %1403 = vmatprep.mubr.bf16.mxu0 %v943
    %1404 = vmatmul.mubr.bf16.gmra.mrb[0].mxu0 %v646
    %v1405 = vpop.f32.mrb[0].mxu0
    %v1406 = vadd.f32 %v168, %v1405
    %v1407 = vpop.f32.mrb[0].mxu0
    %v1408 = vpop.f32.mrb[0].mxu0
    %v1409 = vadd.f32 %v168, %v1408
    %v1410 = vpop.f32.mrb[0].mxu0
    %1411 = vmatprep.mubr.bf16.mxu0 %v946
    %1412 = vmatmul.mubr.bf16.gmra.mrb[0].mxu0 %v648
    %v1413 = vpop.f32.mrb[0].mxu0
    %v1414 = vadd.f32 %v168, %v1413
    %v1415 = vpop.f32.mrb[0].mxu0
    %v1416 = vpop.f32.mrb[0].mxu0
    %v1417 = vadd.f32 %v168, %v1416
    %v1418 = vpop.f32.mrb[0].mxu0
    %1419 = vmatprep.mubr.bf16.mxu0 %v949
    %1420 = vmatmul.mubr.bf16.gmra.mrb[0].mxu0 %v650
    %v1421 = vpop.f32.mrb[0].mxu0
    %v1422 = vadd.f32 %v168, %v1421
    %v1423 = vpop.f32.mrb[0].mxu0
    %v1424 = vpop.f32.mrb[0].mxu0
    %v1425 = vadd.f32 %v168, %v1424
    %v1426 = vpop.f32.mrb[0].mxu0
    %1427 = vmatprep.mubr.bf16.mxu0 %v952
    %1428 = vmatmul.mubr.bf16.gmra.mrb[0].mxu0 %v652
    %v1429 = vpop.f32.mrb[0].mxu0
    %v1430 = vadd.f32 %v168, %v1429
    %v1431 = vpop.f32.mrb[0].mxu0
    %v1432 = vpop.f32.mrb[0].mxu0
    %v1433 = vadd.f32 %v168, %v1432
    %v1434 = vpop.f32.mrb[0].mxu0
    %1435 = vmatprep.mubr.bf16.mxu0 %v955
    %1436 = vmatmul.mubr.bf16.gmra.mrb[0].mxu0 %v654
    %v1437 = vpop.f32.mrb[0].mxu0
    %v1438 = vadd.f32 %v168, %v1437
    %v1439 = vpop.f32.mrb[0].mxu0
    %v1440 = vpop.f32.mrb[0].mxu0
    %v1441 = vadd.f32 %v168, %v1440
    %v1442 = vpop.f32.mrb[0].mxu0
    %1443 = vmatprep.mubr.bf16.mxu0 %v958
    %1444 = vmatmul.mubr.bf16.gmra.mrb[0].mxu0 %v656
    %v1445 = vpop.f32.mrb[0].mxu0
    %v1446 = vadd.f32 %v168, %v1445
    %v1447 = vpop.f32.mrb[0].mxu0
    %v1448 = vpop.f32.mrb[0].mxu0
    %v1449 = vadd.f32 %v168, %v1448
    %v1450 = vpop.f32.mrb[0].mxu0
    %1451 = vmatprep.mubr.bf16.mxu0 %v961
    %1452 = vmatmul.mubr.bf16.gmra.mrb[0].mxu0 %v658
    %v1453 = vpop.f32.mrb[0].mxu0
    %v1454 = vadd.f32 %v168, %v1453
    %v1455 = vpop.f32.mrb[0].mxu0
    %v1456 = vpop.f32.mrb[0].mxu0
    %v1457 = vadd.f32 %v168, %v1456
    %v1458 = vpop.f32.mrb[0].mxu0
    %1459 = vmatprep.mubr.bf16.mxu0 %v964
    %1460 = vmatmul.mubr.bf16.gmra.mrb[0].mxu0 %v660
    %v1461 = vpop.f32.mrb[0].mxu0
    %v1462 = vadd.f32 %v168, %v1461
    %v1463 = vpop.f32.mrb[0].mxu0
    %v1464 = vpop.f32.mrb[0].mxu0
    %v1465 = vadd.f32 %v168, %v1464
    %v1466 = vpop.f32.mrb[0].mxu0
    %1467 = vmatprep.mubr.bf16.mxu0 %v967
    %1468 = vmatmul.mubr.bf16.gmra.mrb[0].mxu0 %v662
    %v1469 = vpop.f32.mrb[0].mxu0
    %v1470 = vadd.f32 %v168, %v1469
    %v1471 = vpop.f32.mrb[0].mxu0
    %v1472 = vpop.f32.mrb[0].mxu0
    %v1473 = vadd.f32 %v168, %v1472
    %v1474 = vpop.f32.mrb[0].mxu0
    %1475 = vmatprep.mubr.bf16.mxu0 %v970
    %1476 = vmatmul.mubr.bf16.gmra.mrb[0].mxu0 %v664
    %v1477 = vpop.f32.mrb[0].mxu0
    %v1478 = vadd.f32 %v168, %v1477
    %v1479 = vpop.f32.mrb[0].mxu0
    %v1480 = vpop.f32.mrb[0].mxu0
    %v1481 = vadd.f32 %v168, %v1480
    %v1482 = vpop.f32.mrb[0].mxu0
    %1483 = vmatprep.mubr.bf16.mxu0 %v973
    %1484 = vmatmul.mubr.bf16.gmra.mrb[0].mxu0 %v666
    %v1485 = vpop.f32.mrb[0].mxu0
    %v1486 = vadd.f32 %v168, %v1485
    %v1487 = vpop.f32.mrb[0].mxu0
    %v1488 = vpop.f32.mrb[0].mxu0
    %v1489 = vadd.f32 %v168, %v1488
    %v1490 = vpop.f32.mrb[0].mxu0
    %1491 = vmatprep.mubr.bf16.mxu0 %v976
    %1492 = vmatmul.mubr.bf16.gmra.mrb[0].mxu0 %v668
    %v1493 = vpop.f32.mrb[0].mxu0
    %v1494 = vadd.f32 %v168, %v1493
    %v1495 = vpop.f32.mrb[0].mxu0
    %v1496 = vpop.f32.mrb[0].mxu0
    %v1497 = vadd.f32 %v168, %v1496
    %v1498 = vpop.f32.mrb[0].mxu0
    %1499 = vmatprep.mubr.bf16.mxu0 %v979
    %1500 = vmatmul.mubr.bf16.gmra.mrb[0].mxu0 %v670
    %v1501 = vpop.f32.mrb[0].mxu0
    %v1502 = vadd.f32 %v168, %v1501
    %v1503 = vpop.f32.mrb[0].mxu0
    %v1504 = vpop.f32.mrb[0].mxu0
    %v1505 = vadd.f32 %v168, %v1504
    %v1506 = vpop.f32.mrb[0].mxu0
    %1507 = vmatprep.mubr.bf16.mxu0 %v982
    %1508 = vmatmul.mubr.bf16.gmra.mrb[0].mxu0 %v672
    %v1509 = vpop.f32.mrb[0].mxu0
    %v1510 = vadd.f32 %v168, %v1509
    %v1511 = vpop.f32.mrb[0].mxu0
    %v1512 = vpop.f32.mrb[0].mxu0
    %v1513 = vadd.f32 %v168, %v1512
    %v1514 = vpop.f32.mrb[0].mxu0
    %1515 = vmatprep.mubr.bf16.mxu0 %v985
    %1516 = vmatmul.mubr.bf16.gmra.mrb[0].mxu0 %v674
    %v1517 = vpop.f32.mrb[0].mxu0
    %v1518 = vadd.f32 %v168, %v1517
    %v1519 = vpop.f32.mrb[0].mxu0
    %v1520 = vpop.f32.mrb[0].mxu0
    %v1521 = vadd.f32 %v168, %v1520
    %v1522 = vpop.f32.mrb[0].mxu0
    %1523 = vmatprep.mubr.bf16.mxu0 %v988
    %1524 = vmatmul.mubr.bf16.gmra.mrb[0].mxu0 %v676
    %v1525 = vpop.f32.mrb[0].mxu0
    %v1526 = vadd.f32 %v168, %v1525
    %v1527 = vpop.f32.mrb[0].mxu0
    %v1528 = vpop.f32.mrb[0].mxu0
    %v1529 = vadd.f32 %v168, %v1528
    %v1530 = vpop.f32.mrb[0].mxu0
    %1531 = vmatprep.mubr.bf16.mxu0 %v991
    %1532 = vmatmul.mubr.bf16.gmra.mrb[0].mxu0 %v678
    %v1533 = vpop.f32.mrb[0].mxu0
    %v1534 = vadd.f32 %v168, %v1533
    %v1535 = vpop.f32.mrb[0].mxu0
    %v1536 = vpop.f32.mrb[0].mxu0
    %v1537 = vadd.f32 %v168, %v1536
    %v1538 = vpop.f32.mrb[0].mxu0
    %1539 = vmatprep.mubr.bf16.mxu0 %v994
    %1540 = vmatmul.mubr.bf16.gmra.mrb[0].mxu0 %v680
    %v1541 = vpop.f32.mrb[0].mxu0
    %v1542 = vadd.f32 %v168, %v1541
    %v1543 = vpop.f32.mrb[0].mxu0
    %v1544 = vpop.f32.mrb[0].mxu0
    %v1545 = vadd.f32 %v168, %v1544
    %v1546 = vpop.f32.mrb[0].mxu0
    %1547 = vdwg.mxu0
    %v1548 = vmax.f32 %v1038, 0.0
    %v1549 = vmax.f32 %v1041, 0.0
    %v1550 = vmax.f32 %v1046, 0.0
    %v1551 = vmax.f32 %v1049, 0.0
    %v1552 = vmax.f32 %v1054, 0.0
    %v1553 = vmax.f32 %v1057, 0.0
    %v1554 = vmax.f32 %v1062, 0.0
    %v1555 = vmax.f32 %v1065, 0.0
    %v1556 = vmax.f32 %v1070, 0.0
    %v1557 = vmax.f32 %v1073, 0.0
    %v1558 = vmax.f32 %v1078, 0.0
    %v1559 = vmax.f32 %v1081, 0.0
    %v1560 = vmax.f32 %v1086, 0.0
    %v1561 = vmax.f32 %v1089, 0.0
    %v1562 = vmax.f32 %v1094, 0.0
    %v1563 = vmax.f32 %v1097, 0.0
    %v1564 = vmax.f32 %v1102, 0.0
    %v1565 = vmax.f32 %v1105, 0.0
    %v1566 = vmax.f32 %v1110, 0.0
    %v1567 = vmax.f32 %v1113, 0.0
    %v1568 = vmax.f32 %v1118, 0.0
    %v1569 = vmax.f32 %v1121, 0.0
    %v1570 = vmax.f32 %v1126, 0.0
    %v1571 = vmax.f32 %v1129, 0.0
    %v1572 = vmax.f32 %v1134, 0.0
    %v1573 = vmax.f32 %v1137, 0.0
    %v1574 = vmax.f32 %v1142, 0.0
    %v1575 = vmax.f32 %v1145, 0.0
    %v1576 = vmax.f32 %v1150, 0.0
    %v1577 = vmax.f32 %v1153, 0.0
    %v1578 = vmax.f32 %v1158, 0.0
    %v1579 = vmax.f32 %v1161, 0.0
    %v1580 = vmax.f32 %v1166, 0.0
    %v1581 = vmax.f32 %v1169, 0.0
    %v1582 = vmax.f32 %v1174, 0.0
    %v1583 = vmax.f32 %v1177, 0.0
    %v1584 = vmax.f32 %v1182, 0.0
    %v1585 = vmax.f32 %v1185, 0.0
    %v1586 = vmax.f32 %v1190, 0.0
    %v1587 = vmax.f32 %v1193, 0.0
    %v1588 = vmax.f32 %v1198, 0.0
    %v1589 = vmax.f32 %v1201, 0.0
    %v1590 = vmax.f32 %v1206, 0.0
    %v1591 = vmax.f32 %v1209, 0.0
    %v1592 = vmax.f32 %v1214, 0.0
    %v1593 = vmax.f32 %v1217, 0.0
    %v1594 = vmax.f32 %v1222, 0.0
    %v1595 = vmax.f32 %v1225, 0.0
    %v1596 = vmax.f32 %v1230, 0.0
    %v1597 = vmax.f32 %v1233, 0.0
    %v1598 = vmax.f32 %v1238, 0.0
    %v1599 = vmax.f32 %v1241, 0.0
    %v1600 = vmax.f32 %v1246, 0.0
    %v1601 = vmax.f32 %v1249, 0.0
    %v1602 = vmax.f32 %v1254, 0.0
    %v1603 = vmax.f32 %v1257, 0.0
    %v1604 = vmax.f32 %v1262, 0.0
    %v1605 = vmax.f32 %v1265, 0.0
    %v1606 = vmax.f32 %v1270, 0.0
    %v1607 = vmax.f32 %v1273, 0.0
    %v1608 = vmax.f32 %v1278, 0.0
    %v1609 = vmax.f32 %v1281, 0.0
    %v1610 = vmax.f32 %v1286, 0.0
    %v1611 = vmax.f32 %v1289, 0.0
    %v1612 = vmax.f32 %v1294, 0.0
    %v1613 = vmax.f32 %v1297, 0.0
    %v1614 = vmax.f32 %v1302, 0.0
    %v1615 = vmax.f32 %v1305, 0.0
    %v1616 = vmax.f32 %v1310, 0.0
    %v1617 = vmax.f32 %v1313, 0.0
    %v1618 = vmax.f32 %v1318, 0.0
    %v1619 = vmax.f32 %v1321, 0.0
    %v1620 = vmax.f32 %v1326, 0.0
    %v1621 = vmax.f32 %v1329, 0.0
    %v1622 = vmax.f32 %v1334, 0.0
    %v1623 = vmax.f32 %v1337, 0.0
    %v1624 = vmax.f32 %v1342, 0.0
    %v1625 = vmax.f32 %v1345, 0.0
    %v1626 = vmax.f32 %v1350, 0.0
    %v1627 = vmax.f32 %v1353, 0.0
    %v1628 = vmax.f32 %v1358, 0.0
    %v1629 = vmax.f32 %v1361, 0.0
    %v1630 = vmax.f32 %v1366, 0.0
    %v1631 = vmax.f32 %v1369, 0.0
    %v1632 = vmax.f32 %v1374, 0.0
    %v1633 = vmax.f32 %v1377, 0.0
    %v1634 = vmax.f32 %v1382, 0.0
    %v1635 = vmax.f32 %v1385, 0.0
    %v1636 = vmax.f32 %v1390, 0.0
    %v1637 = vmax.f32 %v1393, 0.0
    %v1638 = vmax.f32 %v1398, 0.0
    %v1639 = vmax.f32 %v1401, 0.0
    %v1640 = vmax.f32 %v1406, 0.0
    %v1641 = vmax.f32 %v1409, 0.0
    %v1642 = vmax.f32 %v1414, 0.0
    %v1643 = vmax.f32 %v1417, 0.0
    %v1644 = vmax.f32 %v1422, 0.0
    %v1645 = vmax.f32 %v1425, 0.0
    %v1646 = vmax.f32 %v1430, 0.0
    %v1647 = vmax.f32 %v1433, 0.0
    %v1648 = vmax.f32 %v1438, 0.0
    %v1649 = vmax.f32 %v1441, 0.0
    %v1650 = vmax.f32 %v1446, 0.0
    %v1651 = vmax.f32 %v1449, 0.0
    %v1652 = vmax.f32 %v1454, 0.0
    %v1653 = vmax.f32 %v1457, 0.0
    %v1654 = vmax.f32 %v1462, 0.0
    %v1655 = vmax.f32 %v1465, 0.0
    %v1656 = vmax.f32 %v1470, 0.0
    %v1657 = vmax.f32 %v1473, 0.0
    %v1658 = vmax.f32 %v1478, 0.0
    %v1659 = vmax.f32 %v1481, 0.0
    %v1660 = vmax.f32 %v1486, 0.0
    %v1661 = vmax.f32 %v1489, 0.0
    %v1662 = vmax.f32 %v1494, 0.0
    %v1663 = vmax.f32 %v1497, 0.0
    %v1664 = vmax.f32 %v1502, 0.0
    %v1665 = vmax.f32 %v1505, 0.0
    %v1666 = vmax.f32 %v1510, 0.0
    %v1667 = vmax.f32 %v1513, 0.0
    %v1668 = vmax.f32 %v1518, 0.0
    %v1669 = vmax.f32 %v1521, 0.0
    %v1670 = vmax.f32 %v1526, 0.0
    %v1671 = vmax.f32 %v1529, 0.0
    %v1672 = vmax.f32 %v1534, 0.0
    %v1673 = vmax.f32 %v1537, 0.0
    %v1674 = vmax.f32 %v1542, 0.0
    %v1675 = vmax.f32 %v1545, 0.0
    %v1676 = vpack.c.bf16 %v1549, %v1548
    %v1677 = vpack.c.bf16 %v1551, %v1550
    %v1678 = vpack.c.bf16 %v1553, %v1552
    %v1679 = vpack.c.bf16 %v1555, %v1554
    %v1680 = vpack.c.bf16 %v1557, %v1556
    %v1681 = vpack.c.bf16 %v1559, %v1558
    %v1682 = vpack.c.bf16 %v1561, %v1560
    %v1683 = vpack.c.bf16 %v1563, %v1562
    %v1684 = vpack.c.bf16 %v1565, %v1564
    %v1685 = vpack.c.bf16 %v1567, %v1566
    %v1686 = vpack.c.bf16 %v1569, %v1568
    %v1687 = vpack.c.bf16 %v1571, %v1570
    %v1688 = vpack.c.bf16 %v1573, %v1572
    %v1689 = vpack.c.bf16 %v1575, %v1574
    %v1690 = vpack.c.bf16 %v1577, %v1576
    %v1691 = vpack.c.bf16 %v1579, %v1578
    %v1692 = vpack.c.bf16 %v1581, %v1580
    %v1693 = vpack.c.bf16 %v1583, %v1582
    %v1694 = vpack.c.bf16 %v1585, %v1584
    %v1695 = vpack.c.bf16 %v1587, %v1586
    %v1696 = vpack.c.bf16 %v1589, %v1588
    %v1697 = vpack.c.bf16 %v1591, %v1590
    %v1698 = vpack.c.bf16 %v1593, %v1592
    %v1699 = vpack.c.bf16 %v1595, %v1594
    %v1700 = vpack.c.bf16 %v1597, %v1596
    %v1701 = vpack.c.bf16 %v1599, %v1598
    %v1702 = vpack.c.bf16 %v1601, %v1600
    %v1703 = vpack.c.bf16 %v1603, %v1602
    %v1704 = vpack.c.bf16 %v1605, %v1604
    %v1705 = vpack.c.bf16 %v1607, %v1606
    %v1706 = vpack.c.bf16 %v1609, %v1608
    %v1707 = vpack.c.bf16 %v1611, %v1610
    %v1708 = vpack.c.bf16 %v1613, %v1612
    %v1709 = vpack.c.bf16 %v1615, %v1614
    %v1710 = vpack.c.bf16 %v1617, %v1616
    %v1711 = vpack.c.bf16 %v1619, %v1618
    %v1712 = vpack.c.bf16 %v1621, %v1620
    %v1713 = vpack.c.bf16 %v1623, %v1622
    %v1714 = vpack.c.bf16 %v1625, %v1624
    %v1715 = vpack.c.bf16 %v1627, %v1626
    %v1716 = vpack.c.bf16 %v1629, %v1628
    %v1717 = vpack.c.bf16 %v1631, %v1630
    %v1718 = vpack.c.bf16 %v1633, %v1632
    %v1719 = vpack.c.bf16 %v1635, %v1634
    %v1720 = vpack.c.bf16 %v1637, %v1636
    %v1721 = vpack.c.bf16 %v1639, %v1638
    %v1722 = vpack.c.bf16 %v1641, %v1640
    %v1723 = vpack.c.bf16 %v1643, %v1642
    %v1724 = vpack.c.bf16 %v1645, %v1644
    %v1725 = vpack.c.bf16 %v1647, %v1646
    %v1726 = vpack.c.bf16 %v1649, %v1648
    %v1727 = vpack.c.bf16 %v1651, %v1650
    %v1728 = vpack.c.bf16 %v1653, %v1652
    %v1729 = vpack.c.bf16 %v1655, %v1654
    %v1730 = vpack.c.bf16 %v1657, %v1656
    %v1731 = vpack.c.bf16 %v1659, %v1658
    %v1732 = vpack.c.bf16 %v1661, %v1660
    %v1733 = vpack.c.bf16 %v1663, %v1662
    %v1734 = vpack.c.bf16 %v1665, %v1664
    %v1735 = vpack.c.bf16 %v1667, %v1666
    %v1736 = vpack.c.bf16 %v1669, %v1668
    %v1737 = vpack.c.bf16 %v1671, %v1670
    %v1738 = vpack.c.bf16 %v1673, %v1672
    %v1739 = vpack.c.bf16 %v1675, %v1674
    %v1804 = vunpack.c.l.b16 %v1676
    %v1805 = vunpack.c.h.b16 %v1676
    %v1806 = vunpack.c.l.b16 %v1677
    %v1807 = vunpack.c.h.b16 %v1677
    %v1808 = vunpack.c.l.b16 %v1678
    %v1809 = vunpack.c.h.b16 %v1678
    %v1810 = vunpack.c.l.b16 %v1679
    %v1811 = vunpack.c.h.b16 %v1679
    %v1812 = vunpack.c.l.b16 %v1680
    %v1813 = vunpack.c.h.b16 %v1680
    %v1814 = vunpack.c.l.b16 %v1681
    %v1815 = vunpack.c.h.b16 %v1681
    %v1816 = vunpack.c.l.b16 %v1682
    %v1817 = vunpack.c.h.b16 %v1682
    %v1818 = vunpack.c.l.b16 %v1683
    %v1819 = vunpack.c.h.b16 %v1683
    %v1820 = vunpack.c.l.b16 %v1684
    %v1821 = vunpack.c.h.b16 %v1684
    %v1822 = vunpack.c.l.b16 %v1685
    %v1823 = vunpack.c.h.b16 %v1685
    %v1824 = vunpack.c.l.b16 %v1686
    %v1825 = vunpack.c.h.b16 %v1686
    %v1826 = vunpack.c.l.b16 %v1687
    %v1827 = vunpack.c.h.b16 %v1687
    %v1828 = vunpack.c.l.b16 %v1688
    %v1829 = vunpack.c.h.b16 %v1688
    %v1830 = vunpack.c.l.b16 %v1689
    %v1831 = vunpack.c.h.b16 %v1689
    %v1832 = vunpack.c.l.b16 %v1690
    %v1833 = vunpack.c.h.b16 %v1690
    %v1834 = vunpack.c.l.b16 %v1691
    %v1835 = vunpack.c.h.b16 %v1691
    %v1836 = vunpack.c.l.b16 %v1692
    %v1837 = vunpack.c.h.b16 %v1692
    %v1838 = vunpack.c.l.b16 %v1693
    %v1839 = vunpack.c.h.b16 %v1693
    %v1840 = vunpack.c.l.b16 %v1694
    %v1841 = vunpack.c.h.b16 %v1694
    %v1842 = vunpack.c.l.b16 %v1695
    %v1843 = vunpack.c.h.b16 %v1695
    %v1844 = vunpack.c.l.b16 %v1696
    %v1845 = vunpack.c.h.b16 %v1696
    %v1846 = vunpack.c.l.b16 %v1697
    %v1847 = vunpack.c.h.b16 %v1697
    %v1848 = vunpack.c.l.b16 %v1698
    %v1849 = vunpack.c.h.b16 %v1698
    %v1850 = vunpack.c.l.b16 %v1699
    %v1851 = vunpack.c.h.b16 %v1699
    %v1852 = vunpack.c.l.b16 %v1700
    %v1853 = vunpack.c.h.b16 %v1700
    %v1854 = vunpack.c.l.b16 %v1701
    %v1855 = vunpack.c.h.b16 %v1701
    %v1856 = vunpack.c.l.b16 %v1702
    %v1857 = vunpack.c.h.b16 %v1702
    %v1858 = vunpack.c.l.b16 %v1703
    %v1859 = vunpack.c.h.b16 %v1703
    %v1860 = vunpack.c.l.b16 %v1704
    %v1861 = vunpack.c.h.b16 %v1704
    %v1862 = vunpack.c.l.b16 %v1705
    %v1863 = vunpack.c.h.b16 %v1705
    %v1864 = vunpack.c.l.b16 %v1706
    %v1865 = vunpack.c.h.b16 %v1706
    %v1866 = vunpack.c.l.b16 %v1707
    %v1867 = vunpack.c.h.b16 %v1707
    %v1868 = vunpack.c.l.b16 %v1708
    %v1869 = vunpack.c.h.b16 %v1708
    %v1870 = vunpack.c.l.b16 %v1709
    %v1871 = vunpack.c.h.b16 %v1709
    %v1872 = vunpack.c.l.b16 %v1710
    %v1873 = vunpack.c.h.b16 %v1710
    %v1874 = vunpack.c.l.b16 %v1711
    %v1875 = vunpack.c.h.b16 %v1711
    %v1876 = vunpack.c.l.b16 %v1712
    %v1877 = vunpack.c.h.b16 %v1712
    %v1878 = vunpack.c.l.b16 %v1713
    %v1879 = vunpack.c.h.b16 %v1713
    %v1880 = vunpack.c.l.b16 %v1714
    %v1881 = vunpack.c.h.b16 %v1714
    %v1882 = vunpack.c.l.b16 %v1715
    %v1883 = vunpack.c.h.b16 %v1715
    %v1884 = vunpack.c.l.b16 %v1716
    %v1885 = vunpack.c.h.b16 %v1716
    %v1886 = vunpack.c.l.b16 %v1717
    %v1887 = vunpack.c.h.b16 %v1717
    %v1888 = vunpack.c.l.b16 %v1718
    %v1889 = vunpack.c.h.b16 %v1718
    %v1890 = vunpack.c.l.b16 %v1719
    %v1891 = vunpack.c.h.b16 %v1719
    %v1892 = vunpack.c.l.b16 %v1720
    %v1893 = vunpack.c.h.b16 %v1720
    %v1894 = vunpack.c.l.b16 %v1721
    %v1895 = vunpack.c.h.b16 %v1721
    %v1896 = vunpack.c.l.b16 %v1722
    %v1897 = vunpack.c.h.b16 %v1722
    %v1898 = vunpack.c.l.b16 %v1723
    %v1899 = vunpack.c.h.b16 %v1723
    %v1900 = vunpack.c.l.b16 %v1724
    %v1901 = vunpack.c.h.b16 %v1724
    %v1902 = vunpack.c.l.b16 %v1725
    %v1903 = vunpack.c.h.b16 %v1725
    %v1904 = vunpack.c.l.b16 %v1726
    %v1905 = vunpack.c.h.b16 %v1726
    %v1906 = vunpack.c.l.b16 %v1727
    %v1907 = vunpack.c.h.b16 %v1727
    %v1908 = vunpack.c.l.b16 %v1728
    %v1909 = vunpack.c.h.b16 %v1728
    %v1910 = vunpack.c.l.b16 %v1729
    %v1911 = vunpack.c.h.b16 %v1729
    %v1912 = vunpack.c.l.b16 %v1730
    %v1913 = vunpack.c.h.b16 %v1730
    %v1914 = vunpack.c.l.b16 %v1731
    %v1915 = vunpack.c.h.b16 %v1731
    %v1916 = vunpack.c.l.b16 %v1732
    %v1917 = vunpack.c.h.b16 %v1732
    %v1918 = vunpack.c.l.b16 %v1733
    %v1919 = vunpack.c.h.b16 %v1733
    %v1920 = vunpack.c.l.b16 %v1734
    %v1921 = vunpack.c.h.b16 %v1734
    %v1922 = vunpack.c.l.b16 %v1735
    %v1923 = vunpack.c.h.b16 %v1735
    %v1924 = vunpack.c.l.b16 %v1736
    %v1925 = vunpack.c.h.b16 %v1736
    %v1926 = vunpack.c.l.b16 %v1737
    %v1927 = vunpack.c.h.b16 %v1737
    %v1928 = vunpack.c.l.b16 %v1738
    %v1929 = vunpack.c.h.b16 %v1738
    %v1930 = vunpack.c.l.b16 %v1739
    %v1931 = vunpack.c.h.b16 %v1739
    %v1932 = vpack.c.b16 %v1804, %v1804
    %v1933 = vpack.c.b16 %v1805, %v1805
    %v1934 = vpack.c.b16 %v1806, %v1806
    %v1935 = vpack.c.b16 %v1807, %v1807
    %v1936 = vpack.c.b16 %v1808, %v1808
    %v1937 = vpack.c.b16 %v1809, %v1809
    %v1938 = vpack.c.b16 %v1810, %v1810
    %v1939 = vpack.c.b16 %v1811, %v1811
    %v1940 = vpack.c.b16 %v1812, %v1812
    %v1941 = vpack.c.b16 %v1813, %v1813
    %v1942 = vpack.c.b16 %v1814, %v1814
    %v1943 = vpack.c.b16 %v1815, %v1815
    %v1944 = vpack.c.b16 %v1816, %v1816
    %v1945 = vpack.c.b16 %v1817, %v1817
    %v1946 = vpack.c.b16 %v1818, %v1818
    %v1947 = vpack.c.b16 %v1819, %v1819
    %v1948 = vpack.c.b16 %v1820, %v1820
    %v1949 = vpack.c.b16 %v1821, %v1821
    %v1950 = vpack.c.b16 %v1822, %v1822
    %v1951 = vpack.c.b16 %v1823, %v1823
    %v1952 = vpack.c.b16 %v1824, %v1824
    %v1953 = vpack.c.b16 %v1825, %v1825
    %v1954 = vpack.c.b16 %v1826, %v1826
    %v1955 = vpack.c.b16 %v1827, %v1827
    %v1956 = vpack.c.b16 %v1828, %v1828
    %v1957 = vpack.c.b16 %v1829, %v1829
    %v1958 = vpack.c.b16 %v1830, %v1830
    %v1959 = vpack.c.b16 %v1831, %v1831
    %v1960 = vpack.c.b16 %v1832, %v1832
    %v1961 = vpack.c.b16 %v1833, %v1833
    %v1962 = vpack.c.b16 %v1834, %v1834
    %v1963 = vpack.c.b16 %v1835, %v1835
    %v1964 = vpack.c.b16 %v1836, %v1836
    %v1965 = vpack.c.b16 %v1837, %v1837
    %v1966 = vpack.c.b16 %v1838, %v1838
    %v1967 = vpack.c.b16 %v1839, %v1839
    %v1968 = vpack.c.b16 %v1840, %v1840
    %v1969 = vpack.c.b16 %v1841, %v1841
    %v1970 = vpack.c.b16 %v1842, %v1842
    %v1971 = vpack.c.b16 %v1843, %v1843
    %v1972 = vpack.c.b16 %v1844, %v1844
    %v1973 = vpack.c.b16 %v1845, %v1845
    %v1974 = vpack.c.b16 %v1846, %v1846
    %v1975 = vpack.c.b16 %v1847, %v1847
    %v1976 = vpack.c.b16 %v1848, %v1848
    %v1977 = vpack.c.b16 %v1849, %v1849
    %v1978 = vpack.c.b16 %v1850, %v1850
    %v1979 = vpack.c.b16 %v1851, %v1851
    %v1980 = vpack.c.b16 %v1852, %v1852
    %v1981 = vpack.c.b16 %v1853, %v1853
    %v1982 = vpack.c.b16 %v1854, %v1854
    %v1983 = vpack.c.b16 %v1855, %v1855
    %v1984 = vpack.c.b16 %v1856, %v1856
    %v1985 = vpack.c.b16 %v1857, %v1857
    %v1986 = vpack.c.b16 %v1858, %v1858
    %v1987 = vpack.c.b16 %v1859, %v1859
    %v1988 = vpack.c.b16 %v1860, %v1860
    %v1989 = vpack.c.b16 %v1861, %v1861
    %v1990 = vpack.c.b16 %v1862, %v1862
    %v1991 = vpack.c.b16 %v1863, %v1863
    %v1992 = vpack.c.b16 %v1864, %v1864
    %v1993 = vpack.c.b16 %v1865, %v1865
    %v1994 = vpack.c.b16 %v1866, %v1866
    %v1995 = vpack.c.b16 %v1867, %v1867
    %v1996 = vpack.c.b16 %v1868, %v1868
    %v1997 = vpack.c.b16 %v1869, %v1869
    %v1998 = vpack.c.b16 %v1870, %v1870
    %v1999 = vpack.c.b16 %v1871, %v1871
    %v2000 = vpack.c.b16 %v1872, %v1872
    %v2001 = vpack.c.b16 %v1873, %v1873
    %v2002 = vpack.c.b16 %v1874, %v1874
    %v2003 = vpack.c.b16 %v1875, %v1875
    %v2004 = vpack.c.b16 %v1876, %v1876
    %v2005 = vpack.c.b16 %v1877, %v1877
    %v2006 = vpack.c.b16 %v1878, %v1878
    %v2007 = vpack.c.b16 %v1879, %v1879
    %v2008 = vpack.c.b16 %v1880, %v1880
    %v2009 = vpack.c.b16 %v1881, %v1881
    %v2010 = vpack.c.b16 %v1882, %v1882
    %v2011 = vpack.c.b16 %v1883, %v1883
    %v2012 = vpack.c.b16 %v1884, %v1884
    %v2013 = vpack.c.b16 %v1885, %v1885
    %v2014 = vpack.c.b16 %v1886, %v1886
    %v2015 = vpack.c.b16 %v1887, %v1887
    %v2016 = vpack.c.b16 %v1888, %v1888
    %v2017 = vpack.c.b16 %v1889, %v1889
    %v2018 = vpack.c.b16 %v1890, %v1890
    %v2019 = vpack.c.b16 %v1891, %v1891
    %v2020 = vpack.c.b16 %v1892, %v1892
    %v2021 = vpack.c.b16 %v1893, %v1893
    %v2022 = vpack.c.b16 %v1894, %v1894
    %v2023 = vpack.c.b16 %v1895, %v1895
    %v2024 = vpack.c.b16 %v1896, %v1896
    %v2025 = vpack.c.b16 %v1897, %v1897
    %v2026 = vpack.c.b16 %v1898, %v1898
    %v2027 = vpack.c.b16 %v1899, %v1899
    %v2028 = vpack.c.b16 %v1900, %v1900
    %v2029 = vpack.c.b16 %v1901, %v1901
    %v2030 = vpack.c.b16 %v1902, %v1902
    %v2031 = vpack.c.b16 %v1903, %v1903
    %v2032 = vpack.c.b16 %v1904, %v1904
    %v2033 = vpack.c.b16 %v1905, %v1905
    %v2034 = vpack.c.b16 %v1906, %v1906
    %v2035 = vpack.c.b16 %v1907, %v1907
    %v2036 = vpack.c.b16 %v1908, %v1908
    %v2037 = vpack.c.b16 %v1909, %v1909
    %v2038 = vpack.c.b16 %v1910, %v1910
    %v2039 = vpack.c.b16 %v1911, %v1911
    %v2040 = vpack.c.b16 %v1912, %v1912
    %v2041 = vpack.c.b16 %v1913, %v1913
    %v2042 = vpack.c.b16 %v1914, %v1914
    %v2043 = vpack.c.b16 %v1915, %v1915
    %v2044 = vpack.c.b16 %v1916, %v1916
    %v2045 = vpack.c.b16 %v1917, %v1917
    %v2046 = vpack.c.b16 %v1918, %v1918
    %v2047 = vpack.c.b16 %v1919, %v1919
    %v2048 = vpack.c.b16 %v1920, %v1920
    %v2049 = vpack.c.b16 %v1921, %v1921
    %v2050 = vpack.c.b16 %v1922, %v1922
    %v2051 = vpack.c.b16 %v1923, %v1923
    %v2052 = vpack.c.b16 %v1924, %v1924
    %v2053 = vpack.c.b16 %v1925, %v1925
    %v2054 = vpack.c.b16 %v1926, %v1926
    %v2055 = vpack.c.b16 %v1927, %v1927
    %v2056 = vpack.c.b16 %v1928, %v1928
    %v2057 = vpack.c.b16 %v1929, %v1929
    %v2058 = vpack.c.b16 %v1930, %v1930
    %v2059 = vpack.c.b16 %v1931, %v1931
    %vm2188 = vcmask 519168
    %2189 = vst.msk [vmem:[#allocation2] sm:$0xf] %vm2188, %v1932
    %2190 = vst.msk [vmem:[#allocation2 + $0x4] sm:$0xf] %vm2188, %v1933
    %2191 = vst.msk [vmem:[#allocation2 + $0x8] sm:$0xf] %vm2188, %v1934
    %2192 = vst.msk [vmem:[#allocation2 + $0xc] sm:$0xf] %vm2188, %v1935
    %2193 = vst.msk [vmem:[#allocation2 + $0x10] sm:$0xf] %vm2188, %v1936
    %2194 = vst.msk [vmem:[#allocation2 + $0x14] sm:$0xf] %vm2188, %v1937
    %2195 = vst.msk [vmem:[#allocation2 + $0x18] sm:$0xf] %vm2188, %v1938
    %2196 = vst.msk [vmem:[#allocation2 + $0x1c] sm:$0xf] %vm2188, %v1939
    %2197 = vst.msk [vmem:[#allocation2 + $0x20] sm:$0xf] %vm2188, %v1940
    %2198 = vst.msk [vmem:[#allocation2 + $0x24] sm:$0xf] %vm2188, %v1941
    %2199 = vst.msk [vmem:[#allocation2 + $0x28] sm:$0xf] %vm2188, %v1942
    %2200 = vst.msk [vmem:[#allocation2 + $0x2c] sm:$0xf] %vm2188, %v1943
    %2201 = vst.msk [vmem:[#allocation2 + $0x30] sm:$0xf] %vm2188, %v1944
    %2202 = vst.msk [vmem:[#allocation2 + $0x34] sm:$0xf] %vm2188, %v1945
    %2203 = vst.msk [vmem:[#allocation2 + $0x38] sm:$0xf] %vm2188, %v1946
    %2204 = vst.msk [vmem:[#allocation2 + $0x3c] sm:$0xf] %vm2188, %v1947
    %2205 = vst.msk [vmem:[#allocation2 + $0x40] sm:$0xf] %vm2188, %v1948
    %2206 = vst.msk [vmem:[#allocation2 + $0x44] sm:$0xf] %vm2188, %v1949
    %2207 = vst.msk [vmem:[#allocation2 + $0x48] sm:$0xf] %vm2188, %v1950
    %2208 = vst.msk [vmem:[#allocation2 + $0x4c] sm:$0xf] %vm2188, %v1951
    %2209 = vst.msk [vmem:[#allocation2 + $0x50] sm:$0xf] %vm2188, %v1952
    %2210 = vst.msk [vmem:[#allocation2 + $0x54] sm:$0xf] %vm2188, %v1953
    %2211 = vst.msk [vmem:[#allocation2 + $0x58] sm:$0xf] %vm2188, %v1954
    %2212 = vst.msk [vmem:[#allocation2 + $0x5c] sm:$0xf] %vm2188, %v1955
    %2213 = vst.msk [vmem:[#allocation2 + $0x60] sm:$0xf] %vm2188, %v1956
    %2214 = vst.msk [vmem:[#allocation2 + $0x64] sm:$0xf] %vm2188, %v1957
    %2215 = vst.msk [vmem:[#allocation2 + $0x68] sm:$0xf] %vm2188, %v1958
    %2216 = vst.msk [vmem:[#allocation2 + $0x6c] sm:$0xf] %vm2188, %v1959
    %2217 = vst.msk [vmem:[#allocation2 + $0x70] sm:$0xf] %vm2188, %v1960
    %2218 = vst.msk [vmem:[#allocation2 + $0x74] sm:$0xf] %vm2188, %v1961
    %2219 = vst.msk [vmem:[#allocation2 + $0x78] sm:$0xf] %vm2188, %v1962
    %2220 = vst.msk [vmem:[#allocation2 + $0x7c] sm:$0xf] %vm2188, %v1963
    %2221 = vst.msk [vmem:[#allocation2 + $0x80] sm:$0xf] %vm2188, %v1964
    %2222 = vst.msk [vmem:[#allocation2 + $0x84] sm:$0xf] %vm2188, %v1965
    %2223 = vst.msk [vmem:[#allocation2 + $0x88] sm:$0xf] %vm2188, %v1966
    %2224 = vst.msk [vmem:[#allocation2 + $0x8c] sm:$0xf] %vm2188, %v1967
    %2225 = vst.msk [vmem:[#allocation2 + $0x90] sm:$0xf] %vm2188, %v1968
    %2226 = vst.msk [vmem:[#allocation2 + $0x94] sm:$0xf] %vm2188, %v1969
    %2227 = vst.msk [vmem:[#allocation2 + $0x98] sm:$0xf] %vm2188, %v1970
    %2228 = vst.msk [vmem:[#allocation2 + $0x9c] sm:$0xf] %vm2188, %v1971
    %2229 = vst.msk [vmem:[#allocation2 + $0xa0] sm:$0xf] %vm2188, %v1972
    %2230 = vst.msk [vmem:[#allocation2 + $0xa4] sm:$0xf] %vm2188, %v1973
    %2231 = vst.msk [vmem:[#allocation2 + $0xa8] sm:$0xf] %vm2188, %v1974
    %2232 = vst.msk [vmem:[#allocation2 + $0xac] sm:$0xf] %vm2188, %v1975
    %2233 = vst.msk [vmem:[#allocation2 + $0xb0] sm:$0xf] %vm2188, %v1976
    %2234 = vst.msk [vmem:[#allocation2 + $0xb4] sm:$0xf] %vm2188, %v1977
    %2235 = vst.msk [vmem:[#allocation2 + $0xb8] sm:$0xf] %vm2188, %v1978
    %2236 = vst.msk [vmem:[#allocation2 + $0xbc] sm:$0xf] %vm2188, %v1979
    %2237 = vst.msk [vmem:[#allocation2 + $0xc0] sm:$0xf] %vm2188, %v1980
    %2238 = vst.msk [vmem:[#allocation2 + $0xc4] sm:$0xf] %vm2188, %v1981
    %2239 = vst.msk [vmem:[#allocation2 + $0xc8] sm:$0xf] %vm2188, %v1982
    %2240 = vst.msk [vmem:[#allocation2 + $0xcc] sm:$0xf] %vm2188, %v1983
    %2241 = vst.msk [vmem:[#allocation2 + $0xd0] sm:$0xf] %vm2188, %v1984
    %2242 = vst.msk [vmem:[#allocation2 + $0xd4] sm:$0xf] %vm2188, %v1985
    %2243 = vst.msk [vmem:[#allocation2 + $0xd8] sm:$0xf] %vm2188, %v1986
    %2244 = vst.msk [vmem:[#allocation2 + $0xdc] sm:$0xf] %vm2188, %v1987
    %2245 = vst.msk [vmem:[#allocation2 + $0xe0] sm:$0xf] %vm2188, %v1988
    %2246 = vst.msk [vmem:[#allocation2 + $0xe4] sm:$0xf] %vm2188, %v1989
    %2247 = vst.msk [vmem:[#allocation2 + $0xe8] sm:$0xf] %vm2188, %v1990
    %2248 = vst.msk [vmem:[#allocation2 + $0xec] sm:$0xf] %vm2188, %v1991
    %2249 = vst.msk [vmem:[#allocation2 + $0xf0] sm:$0xf] %vm2188, %v1992
    %2250 = vst.msk [vmem:[#allocation2 + $0xf4] sm:$0xf] %vm2188, %v1993
    %2251 = vst.msk [vmem:[#allocation2 + $0xf8] sm:$0xf] %vm2188, %v1994
    %2252 = vst.msk [vmem:[#allocation2 + $0xfc] sm:$0xf] %vm2188, %v1995
    %2253 = vst.msk [vmem:[#allocation2 + $0x100] sm:$0xf] %vm2188, %v1996
    %2254 = vst.msk [vmem:[#allocation2 + $0x104] sm:$0xf] %vm2188, %v1997
    %2255 = vst.msk [vmem:[#allocation2 + $0x108] sm:$0xf] %vm2188, %v1998
    %2256 = vst.msk [vmem:[#allocation2 + $0x10c] sm:$0xf] %vm2188, %v1999
    %2257 = vst.msk [vmem:[#allocation2 + $0x110] sm:$0xf] %vm2188, %v2000
    %2258 = vst.msk [vmem:[#allocation2 + $0x114] sm:$0xf] %vm2188, %v2001
    %2259 = vst.msk [vmem:[#allocation2 + $0x118] sm:$0xf] %vm2188, %v2002
    %2260 = vst.msk [vmem:[#allocation2 + $0x11c] sm:$0xf] %vm2188, %v2003
    %2261 = vst.msk [vmem:[#allocation2 + $0x120] sm:$0xf] %vm2188, %v2004
    %2262 = vst.msk [vmem:[#allocation2 + $0x124] sm:$0xf] %vm2188, %v2005
    %2263 = vst.msk [vmem:[#allocation2 + $0x128] sm:$0xf] %vm2188, %v2006
    %2264 = vst.msk [vmem:[#allocation2 + $0x12c] sm:$0xf] %vm2188, %v2007
    %2265 = vst.msk [vmem:[#allocation2 + $0x130] sm:$0xf] %vm2188, %v2008
    %2266 = vst.msk [vmem:[#allocation2 + $0x134] sm:$0xf] %vm2188, %v2009
    %2267 = vst.msk [vmem:[#allocation2 + $0x138] sm:$0xf] %vm2188, %v2010
    %2268 = vst.msk [vmem:[#allocation2 + $0x13c] sm:$0xf] %vm2188, %v2011
    %2269 = vst.msk [vmem:[#allocation2 + $0x140] sm:$0xf] %vm2188, %v2012
    %2270 = vst.msk [vmem:[#allocation2 + $0x144] sm:$0xf] %vm2188, %v2013
    %2271 = vst.msk [vmem:[#allocation2 + $0x148] sm:$0xf] %vm2188, %v2014
    %2272 = vst.msk [vmem:[#allocation2 + $0x14c] sm:$0xf] %vm2188, %v2015
    %2273 = vst.msk [vmem:[#allocation2 + $0x150] sm:$0xf] %vm2188, %v2016
    %2274 = vst.msk [vmem:[#allocation2 + $0x154] sm:$0xf] %vm2188, %v2017
    %2275 = vst.msk [vmem:[#allocation2 + $0x158] sm:$0xf] %vm2188, %v2018
    %2276 = vst.msk [vmem:[#allocation2 + $0x15c] sm:$0xf] %vm2188, %v2019
    %2277 = vst.msk [vmem:[#allocation2 + $0x160] sm:$0xf] %vm2188, %v2020
    %2278 = vst.msk [vmem:[#allocation2 + $0x164] sm:$0xf] %vm2188, %v2021
    %2279 = vst.msk [vmem:[#allocation2 + $0x168] sm:$0xf] %vm2188, %v2022
    %2280 = vst.msk [vmem:[#allocation2 + $0x16c] sm:$0xf] %vm2188, %v2023
    %2281 = vst.msk [vmem:[#allocation2 + $0x170] sm:$0xf] %vm2188, %v2024
    %2282 = vst.msk [vmem:[#allocation2 + $0x174] sm:$0xf] %vm2188, %v2025
    %2283 = vst.msk [vmem:[#allocation2 + $0x178] sm:$0xf] %vm2188, %v2026
    %2284 = vst.msk [vmem:[#allocation2 + $0x17c] sm:$0xf] %vm2188, %v2027
    %2285 = vst.msk [vmem:[#allocation2 + $0x180] sm:$0xf] %vm2188, %v2028
    %2286 = vst.msk [vmem:[#allocation2 + $0x184] sm:$0xf] %vm2188, %v2029
    %2287 = vst.msk [vmem:[#allocation2 + $0x188] sm:$0xf] %vm2188, %v2030
    %2288 = vst.msk [vmem:[#allocation2 + $0x18c] sm:$0xf] %vm2188, %v2031
    %2289 = vst.msk [vmem:[#allocation2 + $0x190] sm:$0xf] %vm2188, %v2032
    %2290 = vst.msk [vmem:[#allocation2 + $0x194] sm:$0xf] %vm2188, %v2033
    %2291 = vst.msk [vmem:[#allocation2 + $0x198] sm:$0xf] %vm2188, %v2034
    %2292 = vst.msk [vmem:[#allocation2 + $0x19c] sm:$0xf] %vm2188, %v2035
    %2293 = vst.msk [vmem:[#allocation2 + $0x1a0] sm:$0xf] %vm2188, %v2036
    %2294 = vst.msk [vmem:[#allocation2 + $0x1a4] sm:$0xf] %vm2188, %v2037
    %2295 = vst.msk [vmem:[#allocation2 + $0x1a8] sm:$0xf] %vm2188, %v2038
    %2296 = vst.msk [vmem:[#allocation2 + $0x1ac] sm:$0xf] %vm2188, %v2039
    %2297 = vst.msk [vmem:[#allocation2 + $0x1b0] sm:$0xf] %vm2188, %v2040
    %2298 = vst.msk [vmem:[#allocation2 + $0x1b4] sm:$0xf] %vm2188, %v2041
    %2299 = vst.msk [vmem:[#allocation2 + $0x1b8] sm:$0xf] %vm2188, %v2042
    %2300 = vst.msk [vmem:[#allocation2 + $0x1bc] sm:$0xf] %vm2188, %v2043
    %2301 = vst.msk [vmem:[#allocation2 + $0x1c0] sm:$0xf] %vm2188, %v2044
    %2302 = vst.msk [vmem:[#allocation2 + $0x1c4] sm:$0xf] %vm2188, %v2045
    %2303 = vst.msk [vmem:[#allocation2 + $0x1c8] sm:$0xf] %vm2188, %v2046
    %2304 = vst.msk [vmem:[#allocation2 + $0x1cc] sm:$0xf] %vm2188, %v2047
    %2305 = vst.msk [vmem:[#allocation2 + $0x1d0] sm:$0xf] %vm2188, %v2048
    %2306 = vst.msk [vmem:[#allocation2 + $0x1d4] sm:$0xf] %vm2188, %v2049
    %2307 = vst.msk [vmem:[#allocation2 + $0x1d8] sm:$0xf] %vm2188, %v2050
    %2308 = vst.msk [vmem:[#allocation2 + $0x1dc] sm:$0xf] %vm2188, %v2051
    %2309 = vst.msk [vmem:[#allocation2 + $0x1e0] sm:$0xf] %vm2188, %v2052
    %2310 = vst.msk [vmem:[#allocation2 + $0x1e4] sm:$0xf] %vm2188, %v2053
    %2311 = vst.msk [vmem:[#allocation2 + $0x1e8] sm:$0xf] %vm2188, %v2054
    %2312 = vst.msk [vmem:[#allocation2 + $0x1ec] sm:$0xf] %vm2188, %v2055
    %2313 = vst.msk [vmem:[#allocation2 + $0x1f0] sm:$0xf] %vm2188, %v2056
    %2314 = vst.msk [vmem:[#allocation2 + $0x1f4] sm:$0xf] %vm2188, %v2057
    %2315 = vst.msk [vmem:[#allocation2 + $0x1f8] sm:$0xf] %vm2188, %v2058
    %2316 = vst.msk [vmem:[#allocation2 + $0x1fc] sm:$0xf] %vm2188, %v2059
    // Predicated region
    $region14: #{_conv_im2col_jit.1} parent=1 // pred_check
      _
    $region15: #{_conv_im2col_jit.1} parent=1 // pred_check_branch
      %2318 = sbr.rel (0) target = $region17
    $region16: #{_conv_im2col_jit.1} parent=1 // pred_region
      %s2320 = ssub.s32 8192, 8192
      %2321 = vsyncadd [#allocation3], %s2320
      %s2322 = sshll.u32 [#allocation2], 4
      %s2323 = int_to_ptr.vmem [resolvable:$true] %s2322
      %2328 = dma.vmem_to_hbm [thread:$0]  %s2323, 8192, %s3, [#allocation3], 64, 64, 4
    $region17: #{_conv_im2col_jit.1} parent=1 // pred_fallthru
      _
    // Predicated region
    $region18: #{_conv_im2col_jit.1} parent=1 // pred_check
      _
    $region19: #{_conv_im2col_jit.1} parent=1 // pred_check_branch
      %2330 = sbr.rel (0) target = $region21
    $region20: #{_conv_im2col_jit.1} parent=1 // pred_region
      %2331 = dma.done [#allocation3], 8192
    $region21: #{_conv_im2col_jit.1} parent=1 // pred_fallthru
      _
    %2332 = vsyncpa [#allocation3], 1

</llo_original>
